<compile_context>
chip_gen: v5e
topology: v5e:2x2
jax: 0.10.0
libtpu: 0.0.40
codegen_flags: <defaults>
</compile_context>

<pallas_src>
import math
import functools

import jax
import jax.numpy as jnp
from jax.experimental import pallas as pl
from jax.experimental.pallas import tpu as pltpu

# ---------------- small BERT config (consistent with the module, scaled down) -------------
VOCAB_SIZE = 100
HIDDEN = 128
NUM_HEADS = 4
HEAD_DIM = HIDDEN // NUM_HEADS
INTERMEDIATE = 256
NUM_LAYERS = 2
MAX_POS = 16
TYPE_VOCAB = 2
LN_EPS = 1e-12
INIT_RANGE = 0.02

BATCH = 2
SEQ = 8


# ---------------------------------- in-kernel helpers ------------------------------------
def _layer_norm(x, gamma, beta, eps=LN_EPS):
    mu = jnp.mean(x, axis=-1, keepdims=True)
    var = jnp.mean((x - mu) ** 2, axis=-1, keepdims=True)
    return (x - mu) * jax.lax.rsqrt(var + eps) * gamma + beta


def _gelu(x):
    # tanh-approximate GELU (original TF-BERT formulation).
    # TODO(synk): switch to exact erf-based GELU if the reference ACT_STR2FN['gelu'] is exact.
    return 0.5 * x * (1.0 + jnp.tanh(0.7978845608028654 * (x + 0.044715 * x * x * x)))


# ------------------------------------ fused Pallas kernel ---------------------------------
def bert_fused_kernel(emb_ref, bias_ref,
                      wqkv_ref, bqkv_ref, wo_ref, bo_ref,
                      ln1_g_ref, ln1_b_ref,
                      w1_ref, b1_ref, w2_ref, b2_ref,
                      ln2_g_ref, ln2_b_ref,
                      emb_ln_g_ref, emb_ln_b_ref,
                      pool_w_ref, pool_b_ref,
                      emb_out_ref, layer_out_ref, cls_out_ref,
                      x_scr,
                      *, batch, seq, num_heads, head_dim):
    l = pl.program_id(0)
    hidden = num_heads * head_dim

    # ---- step-0 prologue: embeddings sum (done in XLA) -> LayerNorm into resident scratch
    @pl.when(l == 0)
    def _():
        x0 = _layer_norm(emb_ref[...], emb_ln_g_ref[...], emb_ln_b_ref[...])
        x_scr[...] = x0
        emb_out_ref[...] = x0

    x = x_scr[...]                       # (B*S, H), resident across layers
    bias = bias_ref[...]                 # (B, S) additive key bias, precomputed in wrapper

    # ---- fused QKV projection: one (B*S, H) @ (H, 3H) matmul ----
    qkv = jnp.dot(x, wqkv_ref[0], preferred_element_type=jnp.float32) + bqkv_ref[0]

    scale = 1.0 / math.sqrt(head_dim)
    ctx_rows = []
    for b in range(batch):
        rows = slice(b * seq, (b + 1) * seq)
        bias_b = bias[b:b + 1, :]                                 # (1, S)
        head_ctx = []
        for h in range(num_heads):
            qh = qkv[rows, h * head_dim:(h + 1) * head_dim]                    # (S, dh)
            kh = qkv[rows, hidden + h * head_dim:hidden + (h + 1) * head_dim]  # (S, dh)
            vh = qkv[rows, 2 * hidden + h * head_dim:2 * hidden + (h + 1) * head_dim]
            # scores = qh @ kh^T (contract head dim, no explicit transpose)
            s = jax.lax.dot_general(qh, kh, (((1,), (1,)), ((), ())),
                                    preferred_element_type=jnp.float32) * scale
            s = s + bias_b
            s = s - jnp.max(s, axis=-1, keepdims=True)
            p = jnp.exp(s)
            inv = pl.reciprocal(jnp.sum(p, axis=-1, keepdims=True), approx=True)
            p = p * inv                                           # softmax over keys (EUP recip)
            head_ctx.append(jnp.dot(p, vh, preferred_element_type=jnp.float32))
        ctx_rows.append(jnp.concatenate(head_ctx, axis=-1))       # (S, H)
    ctx = jnp.concatenate(ctx_rows, axis=0)                       # (B*S, H)

    # ---- single full-width output projection ----
    attn_out = jnp.dot(ctx, wo_ref[0], preferred_element_type=jnp.float32) + bo_ref[0]

    # Add & Norm 1
    x1 = _layer_norm(x + attn_out, ln1_g_ref[0], ln1_b_ref[0])

    # FFN (flattened over batch*seq)
    h1 = _gelu(jnp.dot(x1, w1_ref[0], preferred_element_type=jnp.float32) + b1_ref[0])
    ffn = jnp.dot(h1, w2_ref[0], preferred_element_type=jnp.float32) + b2_ref[0]

    # Add & Norm 2
    x2 = _layer_norm(x1 + ffn, ln2_g_ref[0], ln2_b_ref[0])

    x_scr[...] = x2
    layer_out_ref[0] = x2

    # ---- epilogue: pooler over the CLS token of each batch element ----
    @pl.when(l == pl.num_programs(0) - 1)
    def _():
        cls_rows = jnp.concatenate(
            [x2[b * seq:b * seq + 1, :] for b in range(batch)], axis=0)        # (B, H)
        cls_out_ref[...] = jnp.tanh(
            jnp.dot(cls_rows, pool_w_ref[...], preferred_element_type=jnp.float32)
            + pool_b_ref[...])


# ------------------------------------ Pallas wrapper ---------------------------------------
def bert_fused(emb_sum, mask_bias, lw, emb_ln_g, emb_ln_b, pool_w, pool_b):
    BS, H = emb_sum.shape
    B, S = mask_bias.shape
    L = lw["wqkv"].shape[0]
    I = lw["w1"].shape[2]

    def cspec(shape):   # full-array block, constant index (resident across layers)
        n = len(shape)
        return pl.BlockSpec(shape, lambda l, n=n: (0,) * n)

    def lspec(shape):   # per-layer block along stacked leading axis (pipelined prefetch)
        n = len(shape)
        return pl.BlockSpec((1,) + shape, lambda l, n=n: (l,) + (0,) * n)

    kernel = functools.partial(bert_fused_kernel, batch=B, seq=S,
                               num_heads=NUM_HEADS, head_dim=H // NUM_HEADS)

    return pl.pallas_call(
        kernel,
        out_shape=(
            jax.ShapeDtypeStruct((BS, H), jnp.float32),        # embedding hidden state
            jax.ShapeDtypeStruct((L, BS, H), jnp.float32),     # per-layer hidden states
            jax.ShapeDtypeStruct((B, H), jnp.float32),         # pooled CLS embedding
        ),
        grid=(L,),
        in_specs=[
            cspec((BS, H)),          # emb_sum
            cspec((B, S)),           # mask bias
            lspec((H, 3 * H)),       # wqkv
            lspec((1, 3 * H)),       # bqkv
            lspec((H, H)),           # wo
            lspec((1, H)),           # bo
            lspec((1, H)),           # ln1 gamma
            lspec((1, H)),           # ln1 beta
            lspec((H, I)),           # w1
            lspec((1, I)),           # b1
            lspec((I, H)),           # w2
            lspec((1, H)),           # b2
            lspec((1, H)),           # ln2 gamma
            lspec((1, H)),           # ln2 beta
            cspec((1, H)),           # emb LN gamma
            cspec((1, H)),           # emb LN beta
            cspec((H, H)),           # pooler W
            cspec((1, H)),           # pooler b
        ],
        out_specs=(
            cspec((BS, H)),
            pl.BlockSpec((1, BS, H), lambda l: (l, 0, 0)),
            cspec((B, H)),
        ),
        scratch_shapes=[pltpu.VMEM((BS, H), jnp.float32)],     # resident activations
        compiler_params=pltpu.CompilerParams(
            dimension_semantics=("arbitrary",)),               # layer axis is sequential
    )(emb_sum, mask_bias,
      lw["wqkv"], lw["bqkv"], lw["wo"], lw["bo"],
      lw["ln1_g"], lw["ln1_b"], lw["w1"], lw["b1"],
      lw["w2"], lw["b2"], lw["ln2_g"], lw["ln2_b"],
      emb_ln_g, emb_ln_b, pool_w, pool_b)


# ------------------------------------ parameter init ---------------------------------------
def init_params(key):
    def normal(k, shape):
        return jax.random.normal(k, shape, jnp.float32) * INIT_RANGE

    keys = iter(jax.random.split(key, 8 + NUM_LAYERS * 8))
    params = {}
    word_emb = normal(next(keys), (VOCAB_SIZE, HIDDEN))
    word_emb = word_emb.at[0].set(0.0)                          # padding_idx=0
    params["word_emb"] = word_emb
    params["pos_emb"] = normal(next(keys), (MAX_POS, HIDDEN))
    params["type_emb"] = normal(next(keys), (TYPE_VOCAB, HIDDEN))
    params["emb_ln_g"] = jnp.ones((1, HIDDEN), jnp.float32)
    params["emb_ln_b"] = jnp.zeros((1, HIDDEN), jnp.float32)

    # per-layer weights, stacked along a leading layer axis (for the fused kernel's grid)
    wqkv, bqkv, wo, bo = [], [], [], []
    ln1_g, ln1_b, w1, b1, w2, b2, ln2_g, ln2_b = [], [], [], [], [], [], [], []
    for _ in range(NUM_LAYERS):
        wq = normal(next(keys), (HIDDEN, HIDDEN))
        wk = normal(next(keys), (HIDDEN, HIDDEN))
        wv = normal(next(keys), (HIDDEN, HIDDEN))
        wqkv.append(jnp.concatenate([wq, wk, wv], axis=1))              # (H, 3H)
        bqkv.append(jnp.zeros((1, 3 * HIDDEN), jnp.float32))
        wo.append(normal(next(keys), (HIDDEN, HIDDEN)))
        bo.append(jnp.zeros((1, HIDDEN), jnp.float32))
        ln1_g.append(jnp.ones((1, HIDDEN), jnp.float32))
        ln1_b.append(jnp.zeros((1, HIDDEN), jnp.float32))
        w1.append(normal(next(keys), (HIDDEN, INTERMEDIATE)))
        b1.append(jnp.zeros((1, INTERMEDIATE), jnp.float32))
        w2.append(normal(next(keys), (INTERMEDIATE, HIDDEN)))
        b2.append(jnp.zeros((1, HIDDEN), jnp.float32))
        ln2_g.append(jnp.ones((1, HIDDEN), jnp.float32))
        ln2_b.append(jnp.zeros((1, HIDDEN), jnp.float32))

    params["layers"] = {
        "wqkv": jnp.stack(wqkv), "bqkv": jnp.stack(bqkv),
        "wo": jnp.stack(wo), "bo": jnp.stack(bo),
        "ln1_g": jnp.stack(ln1_g), "ln1_b": jnp.stack(ln1_b),
        "w1": jnp.stack(w1), "b1": jnp.stack(b1),
        "w2": jnp.stack(w2), "b2": jnp.stack(b2),
        "ln2_g": jnp.stack(ln2_g), "ln2_b": jnp.stack(ln2_b),
    }

    params["pool_w"] = normal(next(keys), (HIDDEN, HIDDEN))
    params["pool_b"] = jnp.zeros((1, HIDDEN), jnp.float32)
    return params


# ------------------------------------ full forward -----------------------------------------
@jax.jit
def _bert_forward_impl(params, token_ids, token_type_ids, token_masks):
    B, S = token_ids.shape
    # embedding gathers + sum are plain-XLA glue; everything after runs in ONE Pallas kernel
    we = jnp.take(params["word_emb"], token_ids, axis=0)        # (B, S, H)
    te = jnp.take(params["type_emb"], token_type_ids, axis=0)   # (B, S, H)
    pe = params["pos_emb"][None, :S, :]                         # (1, S, H)
    emb_sum = (we + te + pe).reshape(B * S, HIDDEN)             # (B*S, H)

    # additive key mask, BERT convention: (1 - mask) * -10000, computed once
    mask_bias = (1.0 - token_masks.astype(jnp.float32)) * (-10000.0)   # (B, S)

    emb_out, layer_outs, cls_embedding = bert_fused(
        emb_sum, mask_bias, params["layers"],
        params["emb_ln_g"], params["emb_ln_b"],
        params["pool_w"], params["pool_b"])

    all_hidden_states = (emb_out.reshape(B, S, HIDDEN),)
    for i in range(NUM_LAYERS):
        all_hidden_states += (layer_outs[i].reshape(B, S, HIDDEN),)
    token_embeddings = all_hidden_states[-1]
    return cls_embedding, token_embeddings, all_hidden_states


def bert_forward(params, token_ids, token_type_ids=None, token_masks=None):
    if token_type_ids is None:
        token_type_ids = token_ids - token_ids                  # zeros, same as reference
    if token_masks is None:
        token_masks = (token_ids > 0).astype(jnp.float32)
    return _bert_forward_impl(params, token_ids, token_type_ids, token_masks)


# ------------------------------------------ main -------------------------------------------
if __name__ == "__main__":
    key = jax.random.PRNGKey(0)
    pkey, dkey = jax.random.split(key)
    params = init_params(pkey)

    # token ids in [0, VOCAB); 0 acts as padding (mask=0)
    token_ids = jax.random.randint(dkey, (BATCH, SEQ), 0, VOCAB_SIZE, dtype=jnp.int32)

    cls_embedding, token_embeddings, all_hidden_states = bert_forward(params, token_ids)
    jax.block_until_ready(cls_embedding)
    jax.block_until_ready(token_embeddings)

    assert cls_embedding.shape == (BATCH, HIDDEN)
    assert token_embeddings.shape == (BATCH, SEQ, HIDDEN)
    assert len(all_hidden_states) == NUM_LAYERS + 1

    print("KERNEL_OK")
</pallas_src>

<mosaic_0001>
module attributes {stable_mosaic.version = 11 : i64} {
  func.func @bert_fused_kernel(%arg0: i32, %arg1: memref<16x128xf32, #tpu.memory_space<vmem>>, %arg2: memref<2x8xf32, #tpu.memory_space<vmem>>, %arg3: memref<1x128x384xf32, #tpu.memory_space<vmem>>, %arg4: memref<1x1x384xf32, #tpu.memory_space<vmem>>, %arg5: memref<1x128x128xf32, #tpu.memory_space<vmem>>, %arg6: memref<1x1x128xf32, #tpu.memory_space<vmem>>, %arg7: memref<1x1x128xf32, #tpu.memory_space<vmem>>, %arg8: memref<1x1x128xf32, #tpu.memory_space<vmem>>, %arg9: memref<1x128x256xf32, #tpu.memory_space<vmem>>, %arg10: memref<1x1x256xf32, #tpu.memory_space<vmem>>, %arg11: memref<1x256x128xf32, #tpu.memory_space<vmem>>, %arg12: memref<1x1x128xf32, #tpu.memory_space<vmem>>, %arg13: memref<1x1x128xf32, #tpu.memory_space<vmem>>, %arg14: memref<1x1x128xf32, #tpu.memory_space<vmem>>, %arg15: memref<1x128xf32, #tpu.memory_space<vmem>>, %arg16: memref<1x128xf32, #tpu.memory_space<vmem>>, %arg17: memref<128x128xf32, #tpu.memory_space<vmem>>, %arg18: memref<1x128xf32, #tpu.memory_space<vmem>>, %arg19: memref<16x128xf32, #tpu.memory_space<vmem>>, %arg20: memref<1x16x128xf32, #tpu.memory_space<vmem>>, %arg21: memref<2x128xf32, #tpu.memory_space<vmem>>, %arg22: memref<16x128xf32, #tpu.memory_space<vmem>>) attributes {dimension_semantics = [#tpu.dimension_semantics<arbitrary>], iteration_bounds = array<i64: 2>, scalar_prefetch = 0 : i64, scratch_operands = 1 : i64, tpu.core_type = #tpu.core_type<tc>, window_params = [{pipeline_mode = #tpu.pipeline_mode<synchronous>, transform_indices = @transform_0, window_bounds = array<i64: 16, 128>}, {pipeline_mode = #tpu.pipeline_mode<synchronous>, transform_indices = @transform_1, window_bounds = array<i64: 2, 8>}, {transform_indices = @transform_2, window_bounds = array<i64: 1, 128, 384>}, {transform_indices = @transform_3, window_bounds = array<i64: 1, 1, 384>}, {transform_indices = @transform_4, window_bounds = array<i64: 1, 128, 128>}, {transform_indices = @transform_5, window_bounds = array<i64: 1, 1, 128>}, {transform_indices = @transform_6, window_bounds = array<i64: 1, 1, 128>}, {transform_indices = @transform_7, window_bounds = array<i64: 1, 1, 128>}, {transform_indices = @transform_8, window_bounds = array<i64: 1, 128, 256>}, {transform_indices = @transform_9, window_bounds = array<i64: 1, 1, 256>}, {transform_indices = @transform_10, window_bounds = array<i64: 1, 256, 128>}, {transform_indices = @transform_11, window_bounds = array<i64: 1, 1, 128>}, {transform_indices = @transform_12, window_bounds = array<i64: 1, 1, 128>}, {transform_indices = @transform_13, window_bounds = array<i64: 1, 1, 128>}, {pipeline_mode = #tpu.pipeline_mode<synchronous>, transform_indices = @transform_14, window_bounds = array<i64: 1, 128>}, {pipeline_mode = #tpu.pipeline_mode<synchronous>, transform_indices = @transform_15, window_bounds = array<i64: 1, 128>}, {pipeline_mode = #tpu.pipeline_mode<synchronous>, transform_indices = @transform_16, window_bounds = array<i64: 128, 128>}, {pipeline_mode = #tpu.pipeline_mode<synchronous>, transform_indices = @transform_17, window_bounds = array<i64: 1, 128>}, {pipeline_mode = #tpu.pipeline_mode<synchronous>, transform_indices = @transform_18, window_bounds = array<i64: 16, 128>}, {transform_indices = @transform_19, window_bounds = array<i64: 1, 16, 128>}, {pipeline_mode = #tpu.pipeline_mode<synchronous>, transform_indices = @transform_20, window_bounds = array<i64: 2, 128>}]} {
    %c0_i32 = arith.constant 0 : i32
    %0 = arith.cmpi eq, %arg0, %c0_i32 : i32
    %1 = arith.extui %0 : i1 to i32
    %c0_i32_0 = arith.constant 0 : i32
    %2 = arith.cmpi ne, %1, %c0_i32_0 : i32
    scf.if %2 {
      %c0_103 = arith.constant 0 : index
      %c0_104 = arith.constant 0 : index
      %264 = vector.load %arg1[%c0_103, %c0_104] : memref<16x128xf32, #tpu.memory_space<vmem>>, vector<16x128xf32>
      %c0_105 = arith.constant 0 : index
      %c0_106 = arith.constant 0 : index
      %265 = vector.load %arg15[%c0_105, %c0_106] : memref<1x128xf32, #tpu.memory_space<vmem>>, vector<1x128xf32>
      %c0_107 = arith.constant 0 : index
      %c0_108 = arith.constant 0 : index
      %266 = vector.load %arg16[%c0_107, %c0_108] : memref<1x128xf32, #tpu.memory_space<vmem>>, vector<1x128xf32>
      %cst_109 = arith.constant dense<0.000000e+00> : vector<16xf32>
      %267 = vector.multi_reduction <add>, %264, %cst_109 [1] : vector<16x128xf32> to vector<16xf32>
      %268 = vector.shape_cast %267 : vector<16xf32> to vector<16x1xf32>
      %cst_110 = arith.constant 1.280000e+02 : f32
      %269 = vector.broadcast %cst_110 : f32 to vector<16x1xf32>
      %270 = arith.divf %268, %269 : vector<16x1xf32>
      %271 = vector.broadcast %270 : vector<16x1xf32> to vector<16x128xf32>
      %272 = arith.subf %264, %271 : vector<16x128xf32>
      %273 = arith.mulf %272, %272 : vector<16x128xf32>
      %cst_111 = arith.constant dense<0.000000e+00> : vector<16xf32>
      %274 = vector.multi_reduction <add>, %273, %cst_111 [1] : vector<16x128xf32> to vector<16xf32>
      %275 = vector.shape_cast %274 : vector<16xf32> to vector<16x1xf32>
      %cst_112 = arith.constant 1.280000e+02 : f32
      %276 = vector.broadcast %cst_112 : f32 to vector<16x1xf32>
      %277 = arith.divf %275, %276 : vector<16x1xf32>
      %278 = vector.broadcast %270 : vector<16x1xf32> to vector<16x128xf32>
      %279 = arith.subf %264, %278 : vector<16x128xf32>
      %cst_113 = arith.constant 9.99999996E-13 : f32
      %280 = vector.broadcast %cst_113 : f32 to vector<16x1xf32>
      %281 = arith.addf %277, %280 : vector<16x1xf32>
      %282 = math.rsqrt %281 : vector<16x1xf32>
      %283 = vector.broadcast %282 : vector<16x1xf32> to vector<16x128xf32>
      %284 = arith.mulf %279, %283 : vector<16x128xf32>
      %285 = vector.broadcast %265 : vector<1x128xf32> to vector<16x128xf32>
      %286 = arith.mulf %284, %285 : vector<16x128xf32>
      %287 = vector.broadcast %266 : vector<1x128xf32> to vector<16x128xf32>
      %288 = arith.addf %286, %287 : vector<16x128xf32>
      %c0_114 = arith.constant 0 : index
      %c0_115 = arith.constant 0 : index
      %289 = vector.load %arg22[%c0_114, %c0_115] : memref<16x128xf32, #tpu.memory_space<vmem>>, vector<16x128xf32>
      tpu.vector_store %arg22[%c0_114, %c0_115], %288 {strides = array<i32>} : memref<16x128xf32, #tpu.memory_space<vmem>>, vector<16x128xf32>,
      %c0_116 = arith.constant 0 : index
      %c0_117 = arith.constant 0 : index
      %290 = vector.load %arg19[%c0_116, %c0_117] : memref<16x128xf32, #tpu.memory_space<vmem>>, vector<16x128xf32>
      tpu.vector_store %arg19[%c0_116, %c0_117], %288 {strides = array<i32>} : memref<16x128xf32, #tpu.memory_space<vmem>>, vector<16x128xf32>,
    } else {
    }
    %c0 = arith.constant 0 : index
    %c0_1 = arith.constant 0 : index
    %3 = vector.load %arg22[%c0, %c0_1] : memref<16x128xf32, #tpu.memory_space<vmem>>, vector<16x128xf32>
    %c0_2 = arith.constant 0 : index
    %c0_3 = arith.constant 0 : index
    %4 = vector.load %arg2[%c0_2, %c0_3] : memref<2x8xf32, #tpu.memory_space<vmem>>, vector<2x8xf32>
    %c0_4 = arith.constant 0 : index
    %c0_5 = arith.constant 0 : index
    %c0_6 = arith.constant 0 : index
    %5 = vector.load %arg3[%c0_4, %c0_5, %c0_6] : memref<1x128x384xf32, #tpu.memory_space<vmem>>, vector<1x128x384xf32>
    %6 = vector.shape_cast %5 : vector<1x128x384xf32> to vector<128x384xf32>
    %cst = arith.constant dense<0.000000e+00> : vector<16x384xf32>
    %7 = tpu.matmul %3, %6, %cst {dimension_numbers = #tpu.dot_dimension_numbers<[1], [0], [0], [1], [0, 0, 1, 1], [], []>} : vector<16x128xf32>, vector<128x384xf32>, vector<16x384xf32> -> vector<16x384xf32>
    %c0_7 = arith.constant 0 : index
    %c0_8 = arith.constant 0 : index
    %c0_9 = arith.constant 0 : index
    %8 = vector.load %arg4[%c0_7, %c0_8, %c0_9] : memref<1x1x384xf32, #tpu.memory_space<vmem>>, vector<1x1x384xf32>
    %9 = vector.shape_cast %8 : vector<1x1x384xf32> to vector<1x384xf32>
    %10 = vector.broadcast %9 : vector<1x384xf32> to vector<16x384xf32>
    %11 = arith.addf %7, %10 : vector<16x384xf32>
    %12 = vector.extract_strided_slice %4 {offsets = [0, 0], sizes = [1, 8], strides = [1, 1]} : vector<2x8xf32> to vector<1x8xf32>
    %13 = vector.extract_strided_slice %11 {offsets = [0, 0], sizes = [8, 32], strides = [1, 1]} : vector<16x384xf32> to vector<8x32xf32>
    %14 = vector.extract_strided_slice %11 {offsets = [0, 128], sizes = [8, 32], strides = [1, 1]} : vector<16x384xf32> to vector<8x32xf32>
    %15 = vector.extract_strided_slice %11 {offsets = [0, 256], sizes = [8, 32], strides = [1, 1]} : vector<16x384xf32> to vector<8x32xf32>
    %cst_10 = arith.constant dense<0.000000e+00> : vector<8x8xf32>
    %16 = tpu.matmul %13, %14, %cst_10 {dimension_numbers = #tpu.dot_dimension_numbers<[1], [1], [0], [0], [0, 0, 1, 0], [], []>} : vector<8x32xf32>, vector<8x32xf32>, vector<8x8xf32> -> vector<8x8xf32>
    %cst_11 = arith.constant 0.176776692 : f32
    %17 = vector.broadcast %cst_11 : f32 to vector<8x8xf32>
    %18 = arith.mulf %16, %17 : vector<8x8xf32>
    %19 = vector.broadcast %12 : vector<1x8xf32> to vector<8x8xf32>
    %20 = arith.addf %18, %19 : vector<8x8xf32>
    %cst_12 = arith.constant dense<0xFF800000> : vector<8xf32>
    %21 = vector.multi_reduction <maximumf>, %20, %cst_12 [1] : vector<8x8xf32> to vector<8xf32>
    %22 = vector.shape_cast %21 : vector<8xf32> to vector<8x1xf32>
    %23 = vector.broadcast %22 : vector<8x1xf32> to vector<8x8xf32>
    %24 = arith.subf %20, %23 : vector<8x8xf32>
    %25 = math.exp %24 : vector<8x8xf32>
    %cst_13 = arith.constant dense<0.000000e+00> : vector<8xf32>
    %26 = vector.multi_reduction <add>, %25, %cst_13 [1] : vector<8x8xf32> to vector<8xf32>
    %27 = vector.shape_cast %26 : vector<8xf32> to vector<8x1xf32>
    %28 = tpu.reciprocal %27 {approx = true} : vector<8x1xf32> -> vector<8x1xf32>
    %29 = vector.broadcast %28 : vector<8x1xf32> to vector<8x8xf32>
    %30 = arith.mulf %25, %29 : vector<8x8xf32>
    %cst_14 = arith.constant dense<0.000000e+00> : vector<8x32xf32>
    %31 = tpu.matmul %30, %15, %cst_14 {dimension_numbers = #tpu.dot_dimension_numbers<[1], [0], [0], [1], [0, 0, 1, 1], [], []>} : vector<8x8xf32>, vector<8x32xf32>, vector<8x32xf32> -> vector<8x32xf32>
    %32 = vector.extract_strided_slice %11 {offsets = [0, 32], sizes = [8, 32], strides = [1, 1]} : vector<16x384xf32> to vector<8x32xf32>
    %33 = vector.extract_strided_slice %11 {offsets = [0, 160], sizes = [8, 32], strides = [1, 1]} : vector<16x384xf32> to vector<8x32xf32>
    %34 = vector.extract_strided_slice %11 {offsets = [0, 288], sizes = [8, 32], strides = [1, 1]} : vector<16x384xf32> to vector<8x32xf32>
    %cst_15 = arith.constant dense<0.000000e+00> : vector<8x8xf32>
    %35 = tpu.matmul %32, %33, %cst_15 {dimension_numbers = #tpu.dot_dimension_numbers<[1], [1], [0], [0], [0, 0, 1, 0], [], []>} : vector<8x32xf32>, vector<8x32xf32>, vector<8x8xf32> -> vector<8x8xf32>
    %cst_16 = arith.constant 0.176776692 : f32
    %36 = vector.broadcast %cst_16 : f32 to vector<8x8xf32>
    %37 = arith.mulf %35, %36 : vector<8x8xf32>
    %38 = vector.broadcast %12 : vector<1x8xf32> to vector<8x8xf32>
    %39 = arith.addf %37, %38 : vector<8x8xf32>
    %cst_17 = arith.constant dense<0xFF800000> : vector<8xf32>
    %40 = vector.multi_reduction <maximumf>, %39, %cst_17 [1] : vector<8x8xf32> to vector<8xf32>
    %41 = vector.shape_cast %40 : vector<8xf32> to vector<8x1xf32>
    %42 = vector.broadcast %41 : vector<8x1xf32> to vector<8x8xf32>
    %43 = arith.subf %39, %42 : vector<8x8xf32>
    %44 = math.exp %43 : vector<8x8xf32>
    %cst_18 = arith.constant dense<0.000000e+00> : vector<8xf32>
    %45 = vector.multi_reduction <add>, %44, %cst_18 [1] : vector<8x8xf32> to vector<8xf32>
    %46 = vector.shape_cast %45 : vector<8xf32> to vector<8x1xf32>
    %47 = tpu.reciprocal %46 {approx = true} : vector<8x1xf32> -> vector<8x1xf32>
    %48 = vector.broadcast %47 : vector<8x1xf32> to vector<8x8xf32>
    %49 = arith.mulf %44, %48 : vector<8x8xf32>
    %cst_19 = arith.constant dense<0.000000e+00> : vector<8x32xf32>
    %50 = tpu.matmul %49, %34, %cst_19 {dimension_numbers = #tpu.dot_dimension_numbers<[1], [0], [0], [1], [0, 0, 1, 1], [], []>} : vector<8x8xf32>, vector<8x32xf32>, vector<8x32xf32> -> vector<8x32xf32>
    %51 = vector.extract_strided_slice %11 {offsets = [0, 64], sizes = [8, 32], strides = [1, 1]} : vector<16x384xf32> to vector<8x32xf32>
    %52 = vector.extract_strided_slice %11 {offsets = [0, 192], sizes = [8, 32], strides = [1, 1]} : vector<16x384xf32> to vector<8x32xf32>
    %53 = vector.extract_strided_slice %11 {offsets = [0, 320], sizes = [8, 32], strides = [1, 1]} : vector<16x384xf32> to vector<8x32xf32>
    %cst_20 = arith.constant dense<0.000000e+00> : vector<8x8xf32>
    %54 = tpu.matmul %51, %52, %cst_20 {dimension_numbers = #tpu.dot_dimension_numbers<[1], [1], [0], [0], [0, 0, 1, 0], [], []>} : vector<8x32xf32>, vector<8x32xf32>, vector<8x8xf32> -> vector<8x8xf32>
    %cst_21 = arith.constant 0.176776692 : f32
    %55 = vector.broadcast %cst_21 : f32 to vector<8x8xf32>
    %56 = arith.mulf %54, %55 : vector<8x8xf32>
    %57 = vector.broadcast %12 : vector<1x8xf32> to vector<8x8xf32>
    %58 = arith.addf %56, %57 : vector<8x8xf32>
    %cst_22 = arith.constant dense<0xFF800000> : vector<8xf32>
    %59 = vector.multi_reduction <maximumf>, %58, %cst_22 [1] : vector<8x8xf32> to vector<8xf32>
    %60 = vector.shape_cast %59 : vector<8xf32> to vector<8x1xf32>
    %61 = vector.broadcast %60 : vector<8x1xf32> to vector<8x8xf32>
    %62 = arith.subf %58, %61 : vector<8x8xf32>
    %63 = math.exp %62 : vector<8x8xf32>
    %cst_23 = arith.constant dense<0.000000e+00> : vector<8xf32>
    %64 = vector.multi_reduction <add>, %63, %cst_23 [1] : vector<8x8xf32> to vector<8xf32>
    %65 = vector.shape_cast %64 : vector<8xf32> to vector<8x1xf32>
    %66 = tpu.reciprocal %65 {approx = true} : vector<8x1xf32> -> vector<8x1xf32>
    %67 = vector.broadcast %66 : vector<8x1xf32> to vector<8x8xf32>
    %68 = arith.mulf %63, %67 : vector<8x8xf32>
    %cst_24 = arith.constant dense<0.000000e+00> : vector<8x32xf32>
    %69 = tpu.matmul %68, %53, %cst_24 {dimension_numbers = #tpu.dot_dimension_numbers<[1], [0], [0], [1], [0, 0, 1, 1], [], []>} : vector<8x8xf32>, vector<8x32xf32>, vector<8x32xf32> -> vector<8x32xf32>
    %70 = vector.extract_strided_slice %11 {offsets = [0, 96], sizes = [8, 32], strides = [1, 1]} : vector<16x384xf32> to vector<8x32xf32>
    %71 = vector.extract_strided_slice %11 {offsets = [0, 224], sizes = [8, 32], strides = [1, 1]} : vector<16x384xf32> to vector<8x32xf32>
    %72 = vector.extract_strided_slice %11 {offsets = [0, 352], sizes = [8, 32], strides = [1, 1]} : vector<16x384xf32> to vector<8x32xf32>
    %cst_25 = arith.constant dense<0.000000e+00> : vector<8x8xf32>
    %73 = tpu.matmul %70, %71, %cst_25 {dimension_numbers = #tpu.dot_dimension_numbers<[1], [1], [0], [0], [0, 0, 1, 0], [], []>} : vector<8x32xf32>, vector<8x32xf32>, vector<8x8xf32> -> vector<8x8xf32>
    %cst_26 = arith.constant 0.176776692 : f32
    %74 = vector.broadcast %cst_26 : f32 to vector<8x8xf32>
    %75 = arith.mulf %73, %74 : vector<8x8xf32>
    %76 = vector.broadcast %12 : vector<1x8xf32> to vector<8x8xf32>
    %77 = arith.addf %75, %76 : vector<8x8xf32>
    %cst_27 = arith.constant dense<0xFF800000> : vector<8xf32>
    %78 = vector.multi_reduction <maximumf>, %77, %cst_27 [1] : vector<8x8xf32> to vector<8xf32>
    %79 = vector.shape_cast %78 : vector<8xf32> to vector<8x1xf32>
    %80 = vector.broadcast %79 : vector<8x1xf32> to vector<8x8xf32>
    %81 = arith.subf %77, %80 : vector<8x8xf32>
    %82 = math.exp %81 : vector<8x8xf32>
    %cst_28 = arith.constant dense<0.000000e+00> : vector<8xf32>
    %83 = vector.multi_reduction <add>, %82, %cst_28 [1] : vector<8x8xf32> to vector<8xf32>
    %84 = vector.shape_cast %83 : vector<8xf32> to vector<8x1xf32>
    %85 = tpu.reciprocal %84 {approx = true} : vector<8x1xf32> -> vector<8x1xf32>
    %86 = vector.broadcast %85 : vector<8x1xf32> to vector<8x8xf32>
    %87 = arith.mulf %82, %86 : vector<8x8xf32>
    %cst_29 = arith.constant dense<0.000000e+00> : vector<8x32xf32>
    %88 = tpu.matmul %87, %72, %cst_29 {dimension_numbers = #tpu.dot_dimension_numbers<[1], [0], [0], [1], [0, 0, 1, 1], [], []>} : vector<8x8xf32>, vector<8x32xf32>, vector<8x32xf32> -> vector<8x32xf32>
    %89 = tpu.concatenate %31, %50, %69, %88 in 1 : vector<8x32xf32>, vector<8x32xf32>, vector<8x32xf32>, vector<8x32xf32> -> vector<8x128xf32>
    %90 = vector.extract_strided_slice %4 {offsets = [1, 0], sizes = [1, 8], strides = [1, 1]} : vector<2x8xf32> to vector<1x8xf32>
    %91 = vector.extract_strided_slice %11 {offsets = [8, 0], sizes = [8, 32], strides = [1, 1]} : vector<16x384xf32> to vector<8x32xf32>
    %92 = vector.extract_strided_slice %11 {offsets = [8, 128], sizes = [8, 32], strides = [1, 1]} : vector<16x384xf32> to vector<8x32xf32>
    %93 = vector.extract_strided_slice %11 {offsets = [8, 256], sizes = [8, 32], strides = [1, 1]} : vector<16x384xf32> to vector<8x32xf32>
    %cst_30 = arith.constant dense<0.000000e+00> : vector<8x8xf32>
    %94 = tpu.matmul %91, %92, %cst_30 {dimension_numbers = #tpu.dot_dimension_numbers<[1], [1], [0], [0], [0, 0, 1, 0], [], []>} : vector<8x32xf32>, vector<8x32xf32>, vector<8x8xf32> -> vector<8x8xf32>
    %cst_31 = arith.constant 0.176776692 : f32
    %95 = vector.broadcast %cst_31 : f32 to vector<8x8xf32>
    %96 = arith.mulf %94, %95 : vector<8x8xf32>
    %97 = vector.broadcast %90 : vector<1x8xf32> to vector<8x8xf32>
    %98 = arith.addf %96, %97 : vector<8x8xf32>
    %cst_32 = arith.constant dense<0xFF800000> : vector<8xf32>
    %99 = vector.multi_reduction <maximumf>, %98, %cst_32 [1] : vector<8x8xf32> to vector<8xf32>
    %100 = vector.shape_cast %99 : vector<8xf32> to vector<8x1xf32>
    %101 = vector.broadcast %100 : vector<8x1xf32> to vector<8x8xf32>
    %102 = arith.subf %98, %101 : vector<8x8xf32>
    %103 = math.exp %102 : vector<8x8xf32>
    %cst_33 = arith.constant dense<0.000000e+00> : vector<8xf32>
    %104 = vector.multi_reduction <add>, %103, %cst_33 [1] : vector<8x8xf32> to vector<8xf32>
    %105 = vector.shape_cast %104 : vector<8xf32> to vector<8x1xf32>
    %106 = tpu.reciprocal %105 {approx = true} : vector<8x1xf32> -> vector<8x1xf32>
    %107 = vector.broadcast %106 : vector<8x1xf32> to vector<8x8xf32>
    %108 = arith.mulf %103, %107 : vector<8x8xf32>
    %cst_34 = arith.constant dense<0.000000e+00> : vector<8x32xf32>
    %109 = tpu.matmul %108, %93, %cst_34 {dimension_numbers = #tpu.dot_dimension_numbers<[1], [0], [0], [1], [0, 0, 1, 1], [], []>} : vector<8x8xf32>, vector<8x32xf32>, vector<8x32xf32> -> vector<8x32xf32>
    %110 = vector.extract_strided_slice %11 {offsets = [8, 32], sizes = [8, 32], strides = [1, 1]} : vector<16x384xf32> to vector<8x32xf32>
    %111 = vector.extract_strided_slice %11 {offsets = [8, 160], sizes = [8, 32], strides = [1, 1]} : vector<16x384xf32> to vector<8x32xf32>
    %112 = vector.extract_strided_slice %11 {offsets = [8, 288], sizes = [8, 32], strides = [1, 1]} : vector<16x384xf32> to vector<8x32xf32>
    %cst_35 = arith.constant dense<0.000000e+00> : vector<8x8xf32>
    %113 = tpu.matmul %110, %111, %cst_35 {dimension_numbers = #tpu.dot_dimension_numbers<[1], [1], [0], [0], [0, 0, 1, 0], [], []>} : vector<8x32xf32>, vector<8x32xf32>, vector<8x8xf32> -> vector<8x8xf32>
    %cst_36 = arith.constant 0.176776692 : f32
    %114 = vector.broadcast %cst_36 : f32 to vector<8x8xf32>
    %115 = arith.mulf %113, %114 : vector<8x8xf32>
    %116 = vector.broadcast %90 : vector<1x8xf32> to vector<8x8xf32>
    %117 = arith.addf %115, %116 : vector<8x8xf32>
    %cst_37 = arith.constant dense<0xFF800000> : vector<8xf32>
    %118 = vector.multi_reduction <maximumf>, %117, %cst_37 [1] : vector<8x8xf32> to vector<8xf32>
    %119 = vector.shape_cast %118 : vector<8xf32> to vector<8x1xf32>
    %120 = vector.broadcast %119 : vector<8x1xf32> to vector<8x8xf32>
    %121 = arith.subf %117, %120 : vector<8x8xf32>
    %122 = math.exp %121 : vector<8x8xf32>
    %cst_38 = arith.constant dense<0.000000e+00> : vector<8xf32>
    %123 = vector.multi_reduction <add>, %122, %cst_38 [1] : vector<8x8xf32> to vector<8xf32>
    %124 = vector.shape_cast %123 : vector<8xf32> to vector<8x1xf32>
    %125 = tpu.reciprocal %124 {approx = true} : vector<8x1xf32> -> vector<8x1xf32>
    %126 = vector.broadcast %125 : vector<8x1xf32> to vector<8x8xf32>
    %127 = arith.mulf %122, %126 : vector<8x8xf32>
    %cst_39 = arith.constant dense<0.000000e+00> : vector<8x32xf32>
    %128 = tpu.matmul %127, %112, %cst_39 {dimension_numbers = #tpu.dot_dimension_numbers<[1], [0], [0], [1], [0, 0, 1, 1], [], []>} : vector<8x8xf32>, vector<8x32xf32>, vector<8x32xf32> -> vector<8x32xf32>
    %129 = vector.extract_strided_slice %11 {offsets = [8, 64], sizes = [8, 32], strides = [1, 1]} : vector<16x384xf32> to vector<8x32xf32>
    %130 = vector.extract_strided_slice %11 {offsets = [8, 192], sizes = [8, 32], strides = [1, 1]} : vector<16x384xf32> to vector<8x32xf32>
    %131 = vector.extract_strided_slice %11 {offsets = [8, 320], sizes = [8, 32], strides = [1, 1]} : vector<16x384xf32> to vector<8x32xf32>
    %cst_40 = arith.constant dense<0.000000e+00> : vector<8x8xf32>
    %132 = tpu.matmul %129, %130, %cst_40 {dimension_numbers = #tpu.dot_dimension_numbers<[1], [1], [0], [0], [0, 0, 1, 0], [], []>} : vector<8x32xf32>, vector<8x32xf32>, vector<8x8xf32> -> vector<8x8xf32>
    %cst_41 = arith.constant 0.176776692 : f32
    %133 = vector.broadcast %cst_41 : f32 to vector<8x8xf32>
    %134 = arith.mulf %132, %133 : vector<8x8xf32>
    %135 = vector.broadcast %90 : vector<1x8xf32> to vector<8x8xf32>
    %136 = arith.addf %134, %135 : vector<8x8xf32>
    %cst_42 = arith.constant dense<0xFF800000> : vector<8xf32>
    %137 = vector.multi_reduction <maximumf>, %136, %cst_42 [1] : vector<8x8xf32> to vector<8xf32>
    %138 = vector.shape_cast %137 : vector<8xf32> to vector<8x1xf32>
    %139 = vector.broadcast %138 : vector<8x1xf32> to vector<8x8xf32>
    %140 = arith.subf %136, %139 : vector<8x8xf32>
    %141 = math.exp %140 : vector<8x8xf32>
    %cst_43 = arith.constant dense<0.000000e+00> : vector<8xf32>
    %142 = vector.multi_reduction <add>, %141, %cst_43 [1] : vector<8x8xf32> to vector<8xf32>
    %143 = vector.shape_cast %142 : vector<8xf32> to vector<8x1xf32>
    %144 = tpu.reciprocal %143 {approx = true} : vector<8x1xf32> -> vector<8x1xf32>
    %145 = vector.broadcast %144 : vector<8x1xf32> to vector<8x8xf32>
    %146 = arith.mulf %141, %145 : vector<8x8xf32>
    %cst_44 = arith.constant dense<0.000000e+00> : vector<8x32xf32>
    %147 = tpu.matmul %146, %131, %cst_44 {dimension_numbers = #tpu.dot_dimension_numbers<[1], [0], [0], [1], [0, 0, 1, 1], [], []>} : vector<8x8xf32>, vector<8x32xf32>, vector<8x32xf32> -> vector<8x32xf32>
    %148 = vector.extract_strided_slice %11 {offsets = [8, 96], sizes = [8, 32], strides = [1, 1]} : vector<16x384xf32> to vector<8x32xf32>
    %149 = vector.extract_strided_slice %11 {offsets = [8, 224], sizes = [8, 32], strides = [1, 1]} : vector<16x384xf32> to vector<8x32xf32>
    %150 = vector.extract_strided_slice %11 {offsets = [8, 352], sizes = [8, 32], strides = [1, 1]} : vector<16x384xf32> to vector<8x32xf32>
    %cst_45 = arith.constant dense<0.000000e+00> : vector<8x8xf32>
    %151 = tpu.matmul %148, %149, %cst_45 {dimension_numbers = #tpu.dot_dimension_numbers<[1], [1], [0], [0], [0, 0, 1, 0], [], []>} : vector<8x32xf32>, vector<8x32xf32>, vector<8x8xf32> -> vector<8x8xf32>
    %cst_46 = arith.constant 0.176776692 : f32
    %152 = vector.broadcast %cst_46 : f32 to vector<8x8xf32>
    %153 = arith.mulf %151, %152 : vector<8x8xf32>
    %154 = vector.broadcast %90 : vector<1x8xf32> to vector<8x8xf32>
    %155 = arith.addf %153, %154 : vector<8x8xf32>
    %cst_47 = arith.constant dense<0xFF800000> : vector<8xf32>
    %156 = vector.multi_reduction <maximumf>, %155, %cst_47 [1] : vector<8x8xf32> to vector<8xf32>
    %157 = vector.shape_cast %156 : vector<8xf32> to vector<8x1xf32>
    %158 = vector.broadcast %157 : vector<8x1xf32> to vector<8x8xf32>
    %159 = arith.subf %155, %158 : vector<8x8xf32>
    %160 = math.exp %159 : vector<8x8xf32>
    %cst_48 = arith.constant dense<0.000000e+00> : vector<8xf32>
    %161 = vector.multi_reduction <add>, %160, %cst_48 [1] : vector<8x8xf32> to vector<8xf32>
    %162 = vector.shape_cast %161 : vector<8xf32> to vector<8x1xf32>
    %163 = tpu.reciprocal %162 {approx = true} : vector<8x1xf32> -> vector<8x1xf32>
    %164 = vector.broadcast %163 : vector<8x1xf32> to vector<8x8xf32>
    %165 = arith.mulf %160, %164 : vector<8x8xf32>
    %cst_49 = arith.constant dense<0.000000e+00> : vector<8x32xf32>
    %166 = tpu.matmul %165, %150, %cst_49 {dimension_numbers = #tpu.dot_dimension_numbers<[1], [0], [0], [1], [0, 0, 1, 1], [], []>} : vector<8x8xf32>, vector<8x32xf32>, vector<8x32xf32> -> vector<8x32xf32>
    %167 = tpu.concatenate %109, %128, %147, %166 in 1 : vector<8x32xf32>, vector<8x32xf32>, vector<8x32xf32>, vector<8x32xf32> -> vector<8x128xf32>
    %168 = tpu.concatenate %89, %167 in 0 : vector<8x128xf32>, vector<8x128xf32> -> vector<16x128xf32>
    %c0_50 = arith.constant 0 : index
    %c0_51 = arith.constant 0 : index
    %c0_52 = arith.constant 0 : index
    %169 = vector.load %arg5[%c0_50, %c0_51, %c0_52] : memref<1x128x128xf32, #tpu.memory_space<vmem>>, vector<1x128x128xf32>
    %170 = vector.shape_cast %169 : vector<1x128x128xf32> to vector<128x128xf32>
    %cst_53 = arith.constant dense<0.000000e+00> : vector<16x128xf32>
    %171 = tpu.matmul %168, %170, %cst_53 {dimension_numbers = #tpu.dot_dimension_numbers<[1], [0], [0], [1], [0, 0, 1, 1], [], []>} : vector<16x128xf32>, vector<128x128xf32>, vector<16x128xf32> -> vector<16x128xf32>
    %c0_54 = arith.constant 0 : index
    %c0_55 = arith.constant 0 : index
    %c0_56 = arith.constant 0 : index
    %172 = vector.load %arg6[%c0_54, %c0_55, %c0_56] : memref<1x1x128xf32, #tpu.memory_space<vmem>>, vector<1x1x128xf32>
    %173 = vector.shape_cast %172 : vector<1x1x128xf32> to vector<1x128xf32>
    %174 = vector.broadcast %173 : vector<1x128xf32> to vector<16x128xf32>
    %175 = arith.addf %171, %174 : vector<16x128xf32>
    %176 = arith.addf %3, %175 : vector<16x128xf32>
    %c0_57 = arith.constant 0 : index
    %c0_58 = arith.constant 0 : index
    %c0_59 = arith.constant 0 : index
    %177 = vector.load %arg7[%c0_57, %c0_58, %c0_59] : memref<1x1x128xf32, #tpu.memory_space<vmem>>, vector<1x1x128xf32>
    %178 = vector.shape_cast %177 : vector<1x1x128xf32> to vector<1x128xf32>
    %c0_60 = arith.constant 0 : index
    %c0_61 = arith.constant 0 : index
    %c0_62 = arith.constant 0 : index
    %179 = vector.load %arg8[%c0_60, %c0_61, %c0_62] : memref<1x1x128xf32, #tpu.memory_space<vmem>>, vector<1x1x128xf32>
    %180 = vector.shape_cast %179 : vector<1x1x128xf32> to vector<1x128xf32>
    %cst_63 = arith.constant dense<0.000000e+00> : vector<16xf32>
    %181 = vector.multi_reduction <add>, %176, %cst_63 [1] : vector<16x128xf32> to vector<16xf32>
    %182 = vector.shape_cast %181 : vector<16xf32> to vector<16x1xf32>
    %cst_64 = arith.constant 1.280000e+02 : f32
    %183 = vector.broadcast %cst_64 : f32 to vector<16x1xf32>
    %184 = arith.divf %182, %183 : vector<16x1xf32>
    %185 = vector.broadcast %184 : vector<16x1xf32> to vector<16x128xf32>
    %186 = arith.subf %176, %185 : vector<16x128xf32>
    %187 = arith.mulf %186, %186 : vector<16x128xf32>
    %cst_65 = arith.constant dense<0.000000e+00> : vector<16xf32>
    %188 = vector.multi_reduction <add>, %187, %cst_65 [1] : vector<16x128xf32> to vector<16xf32>
    %189 = vector.shape_cast %188 : vector<16xf32> to vector<16x1xf32>
    %cst_66 = arith.constant 1.280000e+02 : f32
    %190 = vector.broadcast %cst_66 : f32 to vector<16x1xf32>
    %191 = arith.divf %189, %190 : vector<16x1xf32>
    %192 = vector.broadcast %184 : vector<16x1xf32> to vector<16x128xf32>
    %193 = arith.subf %176, %192 : vector<16x128xf32>
    %cst_67 = arith.constant 9.99999996E-13 : f32
    %194 = vector.broadcast %cst_67 : f32 to vector<16x1xf32>
    %195 = arith.addf %191, %194 : vector<16x1xf32>
    %196 = math.rsqrt %195 : vector<16x1xf32>
    %197 = vector.broadcast %196 : vector<16x1xf32> to vector<16x128xf32>
    %198 = arith.mulf %193, %197 : vector<16x128xf32>
    %199 = vector.broadcast %178 : vector<1x128xf32> to vector<16x128xf32>
    %200 = arith.mulf %198, %199 : vector<16x128xf32>
    %201 = vector.broadcast %180 : vector<1x128xf32> to vector<16x128xf32>
    %202 = arith.addf %200, %201 : vector<16x128xf32>
    %c0_68 = arith.constant 0 : index
    %c0_69 = arith.constant 0 : index
    %c0_70 = arith.constant 0 : index
    %203 = vector.load %arg9[%c0_68, %c0_69, %c0_70] : memref<1x128x256xf32, #tpu.memory_space<vmem>>, vector<1x128x256xf32>
    %204 = vector.shape_cast %203 : vector<1x128x256xf32> to vector<128x256xf32>
    %cst_71 = arith.constant dense<0.000000e+00> : vector<16x256xf32>
    %205 = tpu.matmul %202, %204, %cst_71 {dimension_numbers = #tpu.dot_dimension_numbers<[1], [0], [0], [1], [0, 0, 1, 1], [], []>} : vector<16x128xf32>, vector<128x256xf32>, vector<16x256xf32> -> vector<16x256xf32>
    %c0_72 = arith.constant 0 : index
    %c0_73 = arith.constant 0 : index
    %c0_74 = arith.constant 0 : index
    %206 = vector.load %arg10[%c0_72, %c0_73, %c0_74] : memref<1x1x256xf32, #tpu.memory_space<vmem>>, vector<1x1x256xf32>
    %207 = vector.shape_cast %206 : vector<1x1x256xf32> to vector<1x256xf32>
    %208 = vector.broadcast %207 : vector<1x256xf32> to vector<16x256xf32>
    %209 = arith.addf %205, %208 : vector<16x256xf32>
    %cst_75 = arith.constant 5.000000e-01 : f32
    %210 = vector.broadcast %cst_75 : f32 to vector<16x256xf32>
    %211 = arith.mulf %210, %209 : vector<16x256xf32>
    %cst_76 = arith.constant 4.471500e-02 : f32
    %212 = vector.broadcast %cst_76 : f32 to vector<16x256xf32>
    %213 = arith.mulf %212, %209 : vector<16x256xf32>
    %214 = arith.mulf %213, %209 : vector<16x256xf32>
    %215 = arith.mulf %214, %209 : vector<16x256xf32>
    %216 = arith.addf %209, %215 : vector<16x256xf32>
    %cst_77 = arith.constant 0.797884583 : f32
    %217 = vector.broadcast %cst_77 : f32 to vector<16x256xf32>
    %218 = arith.mulf %217, %216 : vector<16x256xf32>
    %219 = math.tanh %218 : vector<16x256xf32>
    %cst_78 = arith.constant 1.000000e+00 : f32
    %220 = vector.broadcast %cst_78 : f32 to vector<16x256xf32>
    %221 = arith.addf %220, %219 : vector<16x256xf32>
    %222 = arith.mulf %211, %221 : vector<16x256xf32>
    %c0_79 = arith.constant 0 : index
    %c0_80 = arith.constant 0 : index
    %c0_81 = arith.constant 0 : index
    %223 = vector.load %arg11[%c0_79, %c0_80, %c0_81] : memref<1x256x128xf32, #tpu.memory_space<vmem>>, vector<1x256x128xf32>
    %224 = vector.shape_cast %223 : vector<1x256x128xf32> to vector<256x128xf32>
    %cst_82 = arith.constant dense<0.000000e+00> : vector<16x128xf32>
    %225 = tpu.matmul %222, %224, %cst_82 {dimension_numbers = #tpu.dot_dimension_numbers<[1], [0], [0], [1], [0, 0, 1, 1], [], []>} : vector<16x256xf32>, vector<256x128xf32>, vector<16x128xf32> -> vector<16x128xf32>
    %c0_83 = arith.constant 0 : index
    %c0_84 = arith.constant 0 : index
    %c0_85 = arith.constant 0 : index
    %226 = vector.load %arg12[%c0_83, %c0_84, %c0_85] : memref<1x1x128xf32, #tpu.memory_space<vmem>>, vector<1x1x128xf32>
    %227 = vector.shape_cast %226 : vector<1x1x128xf32> to vector<1x128xf32>
    %228 = vector.broadcast %227 : vector<1x128xf32> to vector<16x128xf32>
    %229 = arith.addf %225, %228 : vector<16x128xf32>
    %230 = arith.addf %202, %229 : vector<16x128xf32>
    %c0_86 = arith.constant 0 : index
    %c0_87 = arith.constant 0 : index
    %c0_88 = arith.constant 0 : index
    %231 = vector.load %arg13[%c0_86, %c0_87, %c0_88] : memref<1x1x128xf32, #tpu.memory_space<vmem>>, vector<1x1x128xf32>
    %232 = vector.shape_cast %231 : vector<1x1x128xf32> to vector<1x128xf32>
    %c0_89 = arith.constant 0 : index
    %c0_90 = arith.constant 0 : index
    %c0_91 = arith.constant 0 : index
    %233 = vector.load %arg14[%c0_89, %c0_90, %c0_91] : memref<1x1x128xf32, #tpu.memory_space<vmem>>, vector<1x1x128xf32>
    %234 = vector.shape_cast %233 : vector<1x1x128xf32> to vector<1x128xf32>
    %cst_92 = arith.constant dense<0.000000e+00> : vector<16xf32>
    %235 = vector.multi_reduction <add>, %230, %cst_92 [1] : vector<16x128xf32> to vector<16xf32>
    %236 = vector.shape_cast %235 : vector<16xf32> to vector<16x1xf32>
    %cst_93 = arith.constant 1.280000e+02 : f32
    %237 = vector.broadcast %cst_93 : f32 to vector<16x1xf32>
    %238 = arith.divf %236, %237 : vector<16x1xf32>
    %239 = vector.broadcast %238 : vector<16x1xf32> to vector<16x128xf32>
    %240 = arith.subf %230, %239 : vector<16x128xf32>
    %241 = arith.mulf %240, %240 : vector<16x128xf32>
    %cst_94 = arith.constant dense<0.000000e+00> : vector<16xf32>
    %242 = vector.multi_reduction <add>, %241, %cst_94 [1] : vector<16x128xf32> to vector<16xf32>
    %243 = vector.shape_cast %242 : vector<16xf32> to vector<16x1xf32>
    %cst_95 = arith.constant 1.280000e+02 : f32
    %244 = vector.broadcast %cst_95 : f32 to vector<16x1xf32>
    %245 = arith.divf %243, %244 : vector<16x1xf32>
    %246 = vector.broadcast %238 : vector<16x1xf32> to vector<16x128xf32>
    %247 = arith.subf %230, %246 : vector<16x128xf32>
    %cst_96 = arith.constant 9.99999996E-13 : f32
    %248 = vector.broadcast %cst_96 : f32 to vector<16x1xf32>
    %249 = arith.addf %245, %248 : vector<16x1xf32>
    %250 = math.rsqrt %249 : vector<16x1xf32>
    %251 = vector.broadcast %250 : vector<16x1xf32> to vector<16x128xf32>
    %252 = arith.mulf %247, %251 : vector<16x128xf32>
    %253 = vector.broadcast %232 : vector<1x128xf32> to vector<16x128xf32>
    %254 = arith.mulf %252, %253 : vector<16x128xf32>
    %255 = vector.broadcast %234 : vector<1x128xf32> to vector<16x128xf32>
    %256 = arith.addf %254, %255 : vector<16x128xf32>
    %c0_97 = arith.constant 0 : index
    %c0_98 = arith.constant 0 : index
    %257 = vector.load %arg22[%c0_97, %c0_98] : memref<16x128xf32, #tpu.memory_space<vmem>>, vector<16x128xf32>
    tpu.vector_store %arg22[%c0_97, %c0_98], %256 {strides = array<i32>} : memref<16x128xf32, #tpu.memory_space<vmem>>, vector<16x128xf32>,
    %c0_99 = arith.constant 0 : index
    %c0_100 = arith.constant 0 : index
    %c0_101 = arith.constant 0 : index
    %258 = vector.load %arg20[%c0_99, %c0_100, %c0_101] : memref<1x16x128xf32, #tpu.memory_space<vmem>>, vector<1x16x128xf32>
    %259 = vector.shape_cast %258 : vector<1x16x128xf32> to vector<16x128xf32>
    %260 = vector.shape_cast %256 : vector<16x128xf32> to vector<1x16x128xf32>
    tpu.vector_store %arg20[%c0_99, %c0_100, %c0_101], %260 {strides = array<i32>} : memref<1x16x128xf32, #tpu.memory_space<vmem>>, vector<1x16x128xf32>,
    %c1_i32 = arith.constant 1 : i32
    %261 = arith.cmpi eq, %arg0, %c1_i32 : i32
    %262 = arith.extui %261 : i1 to i32
    %c0_i32_102 = arith.constant 0 : i32
    %263 = arith.cmpi ne, %262, %c0_i32_102 : i32
    scf.if %263 {
      %264 = vector.extract_strided_slice %256 {offsets = [0, 0], sizes = [1, 128], strides = [1, 1]} : vector<16x128xf32> to vector<1x128xf32>
      %265 = vector.extract_strided_slice %256 {offsets = [8, 0], sizes = [1, 128], strides = [1, 1]} : vector<16x128xf32> to vector<1x128xf32>
      %266 = tpu.concatenate %264, %265 in 0 : vector<1x128xf32>, vector<1x128xf32> -> vector<2x128xf32>
      %c0_103 = arith.constant 0 : index
      %c0_104 = arith.constant 0 : index
      %267 = vector.load %arg17[%c0_103, %c0_104] : memref<128x128xf32, #tpu.memory_space<vmem>>, vector<128x128xf32>
      %cst_105 = arith.constant dense<0.000000e+00> : vector<2x128xf32>
      %268 = tpu.matmul %266, %267, %cst_105 {dimension_numbers = #tpu.dot_dimension_numbers<[1], [0], [0], [1], [0, 0, 1, 1], [], []>} : vector<2x128xf32>, vector<128x128xf32>, vector<2x128xf32> -> vector<2x128xf32>
      %c0_106 = arith.constant 0 : index
      %c0_107 = arith.constant 0 : index
      %269 = vector.load %arg18[%c0_106, %c0_107] : memref<1x128xf32, #tpu.memory_space<vmem>>, vector<1x128xf32>
      %270 = vector.broadcast %269 : vector<1x128xf32> to vector<2x128xf32>
      %271 = arith.addf %268, %270 : vector<2x128xf32>
      %272 = math.tanh %271 : vector<2x128xf32>
      %c0_108 = arith.constant 0 : index
      %c0_109 = arith.constant 0 : index
      %273 = vector.load %arg21[%c0_108, %c0_109] : memref<2x128xf32, #tpu.memory_space<vmem>>, vector<2x128xf32>
      tpu.vector_store %arg21[%c0_108, %c0_109], %272 {strides = array<i32>} : memref<2x128xf32, #tpu.memory_space<vmem>>, vector<2x128xf32>,
    } else {
    }
    return
  }
  func.func @transform_0(%arg0: i32) -> (i32, i32) {
    %c0_i32 = arith.constant 0 : i32
    %c0_i32_0 = arith.constant 0 : i32
    %c0_i32_1 = arith.constant 0 : i32
    return %c0_i32, %c0_i32_0 : i32, i32
  }
  func.func @transform_1(%arg0: i32) -> (i32, i32) {
    %c0_i32 = arith.constant 0 : i32
    %c0_i32_0 = arith.constant 0 : i32
    %c0_i32_1 = arith.constant 0 : i32
    return %c0_i32, %c0_i32_0 : i32, i32
  }
  func.func @transform_2(%arg0: i32) -> (i32, i32, i32) {
    %c0_i32 = arith.constant 0 : i32
    %c0_i32_0 = arith.constant 0 : i32
    %c0_i32_1 = arith.constant 0 : i32
    return %arg0, %c0_i32, %c0_i32_0 : i32, i32, i32
  }
  func.func @transform_3(%arg0: i32) -> (i32, i32, i32) {
    %c0_i32 = arith.constant 0 : i32
    %c0_i32_0 = arith.constant 0 : i32
    %c0_i32_1 = arith.constant 0 : i32
    return %arg0, %c0_i32, %c0_i32_0 : i32, i32, i32
  }
  func.func @transform_4(%arg0: i32) -> (i32, i32, i32) {
    %c0_i32 = arith.constant 0 : i32
    %c0_i32_0 = arith.constant 0 : i32
    %c0_i32_1 = arith.constant 0 : i32
    return %arg0, %c0_i32, %c0_i32_0 : i32, i32, i32
  }
  func.func @transform_5(%arg0: i32) -> (i32, i32, i32) {
    %c0_i32 = arith.constant 0 : i32
    %c0_i32_0 = arith.constant 0 : i32
    %c0_i32_1 = arith.constant 0 : i32
    return %arg0, %c0_i32, %c0_i32_0 : i32, i32, i32
  }
  func.func @transform_6(%arg0: i32) -> (i32, i32, i32) {
    %c0_i32 = arith.constant 0 : i32
    %c0_i32_0 = arith.constant 0 : i32
    %c0_i32_1 = arith.constant 0 : i32
    return %arg0, %c0_i32, %c0_i32_0 : i32, i32, i32
  }
  func.func @transform_7(%arg0: i32) -> (i32, i32, i32) {
    %c0_i32 = arith.constant 0 : i32
    %c0_i32_0 = arith.constant 0 : i32
    %c0_i32_1 = arith.constant 0 : i32
    return %arg0, %c0_i32, %c0_i32_0 : i32, i32, i32
  }
  func.func @transform_8(%arg0: i32) -> (i32, i32, i32) {
    %c0_i32 = arith.constant 0 : i32
    %c0_i32_0 = arith.constant 0 : i32
    %c0_i32_1 = arith.constant 0 : i32
    return %arg0, %c0_i32, %c0_i32_0 : i32, i32, i32
  }
  func.func @transform_9(%arg0: i32) -> (i32, i32, i32) {
    %c0_i32 = arith.constant 0 : i32
    %c0_i32_0 = arith.constant 0 : i32
    %c0_i32_1 = arith.constant 0 : i32
    return %arg0, %c0_i32, %c0_i32_0 : i32, i32, i32
  }
  func.func @transform_10(%arg0: i32) -> (i32, i32, i32) {
    %c0_i32 = arith.constant 0 : i32
    %c0_i32_0 = arith.constant 0 : i32
    %c0_i32_1 = arith.constant 0 : i32
    return %arg0, %c0_i32, %c0_i32_0 : i32, i32, i32
  }
  func.func @transform_11(%arg0: i32) -> (i32, i32, i32) {
    %c0_i32 = arith.constant 0 : i32
    %c0_i32_0 = arith.constant 0 : i32
    %c0_i32_1 = arith.constant 0 : i32
    return %arg0, %c0_i32, %c0_i32_0 : i32, i32, i32
  }
  func.func @transform_12(%arg0: i32) -> (i32, i32, i32) {
    %c0_i32 = arith.constant 0 : i32
    %c0_i32_0 = arith.constant 0 : i32
    %c0_i32_1 = arith.constant 0 : i32
    return %arg0, %c0_i32, %c0_i32_0 : i32, i32, i32
  }
  func.func @transform_13(%arg0: i32) -> (i32, i32, i32) {
    %c0_i32 = arith.constant 0 : i32
    %c0_i32_0 = arith.constant 0 : i32
    %c0_i32_1 = arith.constant 0 : i32
    return %arg0, %c0_i32, %c0_i32_0 : i32, i32, i32
  }
  func.func @transform_14(%arg0: i32) -> (i32, i32) {
    %c0_i32 = arith.constant 0 : i32
    %c0_i32_0 = arith.constant 0 : i32
    %c0_i32_1 = arith.constant 0 : i32
    return %c0_i32, %c0_i32_0 : i32, i32
  }
  func.func @transform_15(%arg0: i32) -> (i32, i32) {
    %c0_i32 = arith.constant 0 : i32
    %c0_i32_0 = arith.constant 0 : i32
    %c0_i32_1 = arith.constant 0 : i32
    return %c0_i32, %c0_i32_0 : i32, i32
  }
  func.func @transform_16(%arg0: i32) -> (i32, i32) {
    %c0_i32 = arith.constant 0 : i32
    %c0_i32_0 = arith.constant 0 : i32
    %c0_i32_1 = arith.constant 0 : i32
    return %c0_i32, %c0_i32_0 : i32, i32
  }
  func.func @transform_17(%arg0: i32) -> (i32, i32) {
    %c0_i32 = arith.constant 0 : i32
    %c0_i32_0 = arith.constant 0 : i32
    %c0_i32_1 = arith.constant 0 : i32
    return %c0_i32, %c0_i32_0 : i32, i32
  }
  func.func @transform_18(%arg0: i32) -> (i32, i32) {
    %c0_i32 = arith.constant 0 : i32
    %c0_i32_0 = arith.constant 0 : i32
    %c0_i32_1 = arith.constant 0 : i32
    return %c0_i32, %c0_i32_0 : i32, i32
  }
  func.func @transform_19(%arg0: i32) -> (i32, i32, i32) {
    %c0_i32 = arith.constant 0 : i32
    %c0_i32_0 = arith.constant 0 : i32
    %c0_i32_1 = arith.constant 0 : i32
    return %arg0, %c0_i32, %c0_i32_0 : i32, i32, i32
  }
  func.func @transform_20(%arg0: i32) -> (i32, i32) {
    %c0_i32 = arith.constant 0 : i32
    %c0_i32_0 = arith.constant 0 : i32
    %c0_i32_1 = arith.constant 0 : i32
    return %c0_i32, %c0_i32_0 : i32, i32
  }
}

</mosaic_0001>

<llo_original>
// kernel: _bert_forward_impl.1
$region0: #{_bert_forward_impl.1}
  #allocation0 [shape = 'u32[]', space=smem, size = 0x4, offset = 0x4, fixed_abs, tag = 'smem constant byte address 0x4 - core index']
  #allocation1 [shape = 'u32[72,128]{1,0:T(1,128)}', space=vmem, size = 0x9000, scoped, tag = 'internal scratch']
  #allocation2 [shape = 'f32[16,128]{1,0:T(8,128)}', space=vmem, size = 0x2000, scoped, tag = 'scratch operand']
  %s0 = inlined_call_operand.vmem [shape: f32[16,128], index: 0, kind: input, shape index: {}]
  %s1 = inlined_call_operand.vmem [shape: f32[2,8], index: 1, kind: input, shape index: {}]
  %s2 = inlined_call_operand.hbm [shape: f32[2,128,384], index: 2, kind: input, shape index: {}]
  %s3 = inlined_call_operand.vmem [shape: f32[2,1,384], index: 3, kind: input, shape index: {}]
  %s4 = inlined_call_operand.vmem [shape: f32[2,128,128], index: 4, kind: input, shape index: {}]
  %s5 = inlined_call_operand.vmem [shape: f32[2,1,128], index: 5, kind: input, shape index: {}]
  %s6 = inlined_call_operand.vmem [shape: f32[2,1,128], index: 6, kind: input, shape index: {}]
  %s7 = inlined_call_operand.vmem [shape: f32[2,1,128], index: 7, kind: input, shape index: {}]
  %s8 = inlined_call_operand.hbm [shape: f32[2,128,256], index: 8, kind: input, shape index: {}]
  %s9 = inlined_call_operand.vmem [shape: f32[2,1,256], index: 9, kind: input, shape index: {}]
  %s10 = inlined_call_operand.hbm [shape: f32[2,256,128], index: 10, kind: input, shape index: {}]
  %s11 = inlined_call_operand.vmem [shape: f32[2,1,128], index: 11, kind: input, shape index: {}]
  %s12 = inlined_call_operand.vmem [shape: f32[2,1,128], index: 12, kind: input, shape index: {}]
  %s13 = inlined_call_operand.vmem [shape: f32[2,1,128], index: 13, kind: input, shape index: {}]
  %s14 = inlined_call_operand.vmem [shape: f32[1,128], index: 14, kind: input, shape index: {}]
  %s15 = inlined_call_operand.vmem [shape: f32[1,128], index: 15, kind: input, shape index: {}]
  %s16 = inlined_call_operand.hbm [shape: f32[128,128], index: 16, kind: input, shape index: {}]
  %s17 = inlined_call_operand.vmem [shape: f32[1,128], index: 17, kind: input, shape index: {}]
  %s18 = inlined_call_operand.hbm [shape: f32[16,128], index: 18, kind: output, shape index: {0}]
  %s19 = inlined_call_operand.vmem [shape: f32[2,16,128], index: 19, kind: output, shape index: {1}]
  %s20 = inlined_call_operand.hbm [shape: f32[2,128], index: 20, kind: output, shape index: {2}]
  %21 = xla_tuple %s18, %s19, %s20
  %s22 = sld [smem:[#allocation0]]
  $region145: #{_bert_forward_impl.1} parent=0
    _
  %s24 = ssub.s32 1, %s22
  %s25 = scalar_select 0, %s24, %s22
  $region1: #{_bert_forward_impl.1} parent=0
    #allocation3 [shape = 'u8[393216]{0}', space=vmem, size = 0x60000, scoped, tag = 'input window, operand 2']
    #allocation4 [shape = 's32[2]{0}', space=sflag, size = 0x8, scoped, tag = 'scoped memory for _bert_forward_impl.1']
    #allocation5 [shape = 's32[2]{0}', space=sflag, size = 0x8, scoped, tag = 'scoped memory for _bert_forward_impl.1']
    #allocation6 [shape = 'u8[262144]{0}', space=vmem, size = 0x40000, scoped, tag = 'input window, operand 8']
    #allocation7 [shape = 's32[2]{0}', space=sflag, size = 0x8, scoped, tag = 'scoped memory for _bert_forward_impl.1']
    #allocation8 [shape = 'u8[262144]{0}', space=vmem, size = 0x40000, scoped, tag = 'input window, operand 10']
    #allocation9 [shape = 'u8[65536]{0}', space=vmem, size = 0x10000, scoped, tag = 'input window, operand 16, single buffered']
    #allocation10 [shape = 's32[1]{0}', space=sflag, size = 0x4, scoped, tag = 'scoped memory for _bert_forward_impl.1']
    #allocation11 [shape = 'u8[8192]{0}', space=vmem, size = 0x2000, scoped, tag = 'output window, operand 0, single buffered']
    #allocation12 [shape = 'u8[1024]{0}', space=vmem, size = 0x400, scoped, tag = 'output window, operand 2, single buffered']
    #allocation13 [shape = 's32[1]{0}', space=sflag, size = 0x4, scoped, tag = 'scoped memory for _bert_forward_impl.1']
    %26 = vsyncpa [#allocation4], 0
    %s27 = scalar_lea.sflag [#allocation4], 1
    %28 = vsyncpa %s27, 0
    %29 = vsyncpa [#allocation7], 0
    %s30 = scalar_lea.sflag [#allocation7], 1
    %31 = vsyncpa %s30, 0
    %32 = vsyncpa [#allocation10], 0
    %33 = vsyncpa [#allocation5], 0
    %34 = vsyncpa [#allocation13], 0
    loop: start=0, step=1, limit=4
    $region2: #{_bert_forward_impl.1} parent=1 // loop_pre_header
      _
    $region3: #{_bert_forward_impl.1} parent=1 // loop_header
      %s36 = sphi 0, %s40
      %p37 = scmp.ge.s32.totalorder %s36, 4
      %s44 = sphi 0, %s44
      %s46 = sphi 0, %s44
      %s47 = sphi 0, %s46
      %s61 = sphi 0, %s47
      %s65 = sphi 0, %s65
      %s67 = sphi 0, %s65
      %s68 = sphi 0, %s67
      %s82 = sphi 0, %s68
      %s88 = sphi 0, %s90
      %s91 = sphi 0, %s88
      %s92 = sphi 0, %s91
      %s108 = sphi 0, %s92
      %s114 = sphi 0, %s116
      %s117 = sphi 0, %s114
      %s118 = sphi 0, %s117
      %s134 = sphi 0, %s118
      %s140 = sphi 0, %s142
      %s143 = sphi 0, %s140
      %s144 = sphi 0, %s143
      %s160 = sphi 0, %s144
      %s166 = sphi 0, %s168
      %s169 = sphi 0, %s166
      %s170 = sphi 0, %s169
      %s186 = sphi 0, %s170
      %s192 = sphi 0, %s194
      %s195 = sphi 0, %s192
      %s196 = sphi 0, %s195
      %s212 = sphi 0, %s196
      %s218 = sphi 0, %s220
      %s221 = sphi 0, %s218
      %s222 = sphi 0, %s221
      %s238 = sphi 0, %s222
      %s244 = sphi 0, %s246
      %s247 = sphi 0, %s244
      %s248 = sphi 0, %s247
      %s264 = sphi 0, %s248
      %s270 = sphi 0, %s272
      %s273 = sphi 0, %s270
      %s274 = sphi 0, %s273
      %s290 = sphi 0, %s274
      %s296 = sphi 0, %s298
      %s299 = sphi 0, %s296
      %s300 = sphi 0, %s299
      %s316 = sphi 0, %s300
      %s322 = sphi 0, %s324
      %s325 = sphi 0, %s322
      %s326 = sphi 0, %s325
      %s342 = sphi 0, %s326
      %s348 = sphi 0, %s350
      %s351 = sphi 0, %s348
      %s352 = sphi 0, %s351
      %s368 = sphi 0, %s352
      %s374 = sphi 0, %s376
      %s377 = sphi 0, %s374
      %s378 = sphi 0, %s377
      %s394 = sphi 0, %s378
      %s398 = sphi 0, %s398
      %s400 = sphi 0, %s398
      %s401 = sphi 0, %s400
      %s415 = sphi 0, %s401
      %s419 = sphi 0, %s419
      %s421 = sphi 0, %s419
      %s422 = sphi 0, %s421
      %s436 = sphi 0, %s422
      %s440 = sphi 0, %s440
      %s442 = sphi 0, %s440
      %s443 = sphi 0, %s442
      %s457 = sphi 0, %s443
      %s461 = sphi 0, %s461
      %s463 = sphi 0, %s461
      %s464 = sphi 0, %s463
      %s478 = sphi 0, %s464
      %s482 = sphi 0, %s482
      %s484 = sphi 0, %s482
      %s485 = sphi 0, %s484
      %s499 = sphi 0, %s485
      %s505 = sphi 0, %s507
      %s508 = sphi 0, %s505
      %s509 = sphi 0, %s508
      %s525 = sphi 0, %s509
      %s529 = sphi 0, %s529
      %s531 = sphi 0, %s529
      %s532 = sphi 0, %s531
      %s546 = sphi 0, %s532
    $region4: #{_bert_forward_impl.1} parent=1 // loop_header_branch
      %39 = sbr.rel (%p37) target = $region8
    $region5: #{_bert_forward_impl.1} parent=1 // loop_body
      %s41 = ssub.s32 %s36, 1
      %s42 = ssub.s32 %s36, 2
      %s43 = sadd.s32 %s36, 1
      %s45 = sadd.s32 %s44, 1
      %p48 = scmp.eq.s32.totalorder %s36, 1
      %p49 = scmp.ne.s32.totalorder %s44, %s46
      %p50 = scmp.eq.s32.totalorder %s36, 0
      %p51 = por %p49, %p50
      %p52 = scmp.ne.s32.totalorder %s44, %s46
      %p53 = scmp.eq.s32.totalorder %s41, 1
      %p54 = por %p52, %p53
      %p55 = scmp.ne.s32.totalorder %s46, %s47
      %p56 = scmp.eq.s32.totalorder %s41, 0
      %p57 = por %p55, %p56
      %p58 = scmp.ne.s32.totalorder %s46, %s47
      %p59 = scmp.eq.s32.totalorder %s42, 1
      %p60 = por %p58, %p59
      %p62 = scmp.ne.s32.totalorder %s47, %s61
      %p63 = scmp.eq.s32.totalorder %s42, 0
      %p64 = por %p62, %p63
      %s66 = sadd.s32 %s65, 1
      %p69 = scmp.eq.s32.totalorder %s36, 1
      %p70 = scmp.ne.s32.totalorder %s65, %s67
      %p71 = scmp.eq.s32.totalorder %s36, 0
      %p72 = por %p70, %p71
      %p73 = scmp.ne.s32.totalorder %s65, %s67
      %p74 = scmp.eq.s32.totalorder %s41, 1
      %p75 = por %p73, %p74
      %p76 = scmp.ne.s32.totalorder %s67, %s68
      %p77 = scmp.eq.s32.totalorder %s41, 0
      %p78 = por %p76, %p77
      %p79 = scmp.ne.s32.totalorder %s67, %s68
      %p80 = scmp.eq.s32.totalorder %s42, 1
      %p81 = por %p79, %p80
      %p83 = scmp.ne.s32.totalorder %s68, %s82
      %p84 = scmp.eq.s32.totalorder %s42, 0
      %p85 = por %p83, %p84
      %s86 = ssub.s32 %s36, %s43
      %p87 = scmp.eq.s32.totalorder %s86, 0
      %s89 = sadd.s32 %s88, 1
      %s90 = scalar_select %p87, %s88, %s89
      %p93 = pneg %p87
      %p94 = scmp.eq.s32.totalorder %s36, 1
      %p95 = por %p93, %p94
      %p96 = scmp.ne.s32.totalorder %s88, %s91
      %p97 = scmp.eq.s32.totalorder %s36, 0
      %p98 = por %p96, %p97
      %p99 = scmp.ne.s32.totalorder %s88, %s91
      %p100 = scmp.eq.s32.totalorder %s41, 1
      %p101 = por %p99, %p100
      %p102 = scmp.ne.s32.totalorder %s91, %s92
      %p103 = scmp.eq.s32.totalorder %s41, 0
      %p104 = por %p102, %p103
      %p105 = scmp.ne.s32.totalorder %s91, %s92
      %p106 = scmp.eq.s32.totalorder %s42, 1
      %p107 = por %p105, %p106
      %p109 = scmp.ne.s32.totalorder %s92, %s108
      %p110 = scmp.eq.s32.totalorder %s42, 0
      %p111 = por %p109, %p110
      %s112 = ssub.s32 %s36, %s43
      %p113 = scmp.eq.s32.totalorder %s112, 0
      %s115 = sadd.s32 %s114, 1
      %s116 = scalar_select %p113, %s114, %s115
      %p119 = pneg %p113
      %p120 = scmp.eq.s32.totalorder %s36, 1
      %p121 = por %p119, %p120
      %p122 = scmp.ne.s32.totalorder %s114, %s117
      %p123 = scmp.eq.s32.totalorder %s36, 0
      %p124 = por %p122, %p123
      %p125 = scmp.ne.s32.totalorder %s114, %s117
      %p126 = scmp.eq.s32.totalorder %s41, 1
      %p127 = por %p125, %p126
      %p128 = scmp.ne.s32.totalorder %s117, %s118
      %p129 = scmp.eq.s32.totalorder %s41, 0
      %p130 = por %p128, %p129
      %p131 = scmp.ne.s32.totalorder %s117, %s118
      %p132 = scmp.eq.s32.totalorder %s42, 1
      %p133 = por %p131, %p132
      %p135 = scmp.ne.s32.totalorder %s118, %s134
      %p136 = scmp.eq.s32.totalorder %s42, 0
      %p137 = por %p135, %p136
      %s138 = ssub.s32 %s36, %s43
      %p139 = scmp.eq.s32.totalorder %s138, 0
      %s141 = sadd.s32 %s140, 1
      %s142 = scalar_select %p139, %s140, %s141
      %p145 = pneg %p139
      %p146 = scmp.eq.s32.totalorder %s36, 1
      %p147 = por %p145, %p146
      %p148 = scmp.ne.s32.totalorder %s140, %s143
      %p149 = scmp.eq.s32.totalorder %s36, 0
      %p150 = por %p148, %p149
      %p151 = scmp.ne.s32.totalorder %s140, %s143
      %p152 = scmp.eq.s32.totalorder %s41, 1
      %p153 = por %p151, %p152
      %p154 = scmp.ne.s32.totalorder %s143, %s144
      %p155 = scmp.eq.s32.totalorder %s41, 0
      %p156 = por %p154, %p155
      %p157 = scmp.ne.s32.totalorder %s143, %s144
      %p158 = scmp.eq.s32.totalorder %s42, 1
      %p159 = por %p157, %p158
      %p161 = scmp.ne.s32.totalorder %s144, %s160
      %p162 = scmp.eq.s32.totalorder %s42, 0
      %p163 = por %p161, %p162
      %s164 = ssub.s32 %s36, %s43
      %p165 = scmp.eq.s32.totalorder %s164, 0
      %s167 = sadd.s32 %s166, 1
      %s168 = scalar_select %p165, %s166, %s167
      %p171 = pneg %p165
      %p172 = scmp.eq.s32.totalorder %s36, 1
      %p173 = por %p171, %p172
      %p174 = scmp.ne.s32.totalorder %s166, %s169
      %p175 = scmp.eq.s32.totalorder %s36, 0
      %p176 = por %p174, %p175
      %p177 = scmp.ne.s32.totalorder %s166, %s169
      %p178 = scmp.eq.s32.totalorder %s41, 1
      %p179 = por %p177, %p178
      %p180 = scmp.ne.s32.totalorder %s169, %s170
      %p181 = scmp.eq.s32.totalorder %s41, 0
      %p182 = por %p180, %p181
      %p183 = scmp.ne.s32.totalorder %s169, %s170
      %p184 = scmp.eq.s32.totalorder %s42, 1
      %p185 = por %p183, %p184
      %p187 = scmp.ne.s32.totalorder %s170, %s186
      %p188 = scmp.eq.s32.totalorder %s42, 0
      %p189 = por %p187, %p188
      %s190 = ssub.s32 %s36, %s43
      %p191 = scmp.eq.s32.totalorder %s190, 0
      %s193 = sadd.s32 %s192, 1
      %s194 = scalar_select %p191, %s192, %s193
      %p197 = pneg %p191
      %p198 = scmp.eq.s32.totalorder %s36, 1
      %p199 = por %p197, %p198
      %p200 = scmp.ne.s32.totalorder %s192, %s195
      %p201 = scmp.eq.s32.totalorder %s36, 0
      %p202 = por %p200, %p201
      %p203 = scmp.ne.s32.totalorder %s192, %s195
      %p204 = scmp.eq.s32.totalorder %s41, 1
      %p205 = por %p203, %p204
      %p206 = scmp.ne.s32.totalorder %s195, %s196
      %p207 = scmp.eq.s32.totalorder %s41, 0
      %p208 = por %p206, %p207
      %p209 = scmp.ne.s32.totalorder %s195, %s196
      %p210 = scmp.eq.s32.totalorder %s42, 1
      %p211 = por %p209, %p210
      %p213 = scmp.ne.s32.totalorder %s196, %s212
      %p214 = scmp.eq.s32.totalorder %s42, 0
      %p215 = por %p213, %p214
      %s216 = ssub.s32 %s36, %s43
      %p217 = scmp.eq.s32.totalorder %s216, 0
      %s219 = sadd.s32 %s218, 1
      %s220 = scalar_select %p217, %s218, %s219
      %p223 = pneg %p217
      %p224 = scmp.eq.s32.totalorder %s36, 1
      %p225 = por %p223, %p224
      %p226 = scmp.ne.s32.totalorder %s218, %s221
      %p227 = scmp.eq.s32.totalorder %s36, 0
      %p228 = por %p226, %p227
      %p229 = scmp.ne.s32.totalorder %s218, %s221
      %p230 = scmp.eq.s32.totalorder %s41, 1
      %p231 = por %p229, %p230
      %p232 = scmp.ne.s32.totalorder %s221, %s222
      %p233 = scmp.eq.s32.totalorder %s41, 0
      %p234 = por %p232, %p233
      %p235 = scmp.ne.s32.totalorder %s221, %s222
      %p236 = scmp.eq.s32.totalorder %s42, 1
      %p237 = por %p235, %p236
      %p239 = scmp.ne.s32.totalorder %s222, %s238
      %p240 = scmp.eq.s32.totalorder %s42, 0
      %p241 = por %p239, %p240
      %s242 = ssub.s32 %s36, %s43
      %p243 = scmp.eq.s32.totalorder %s242, 0
      %s245 = sadd.s32 %s244, 1
      %s246 = scalar_select %p243, %s244, %s245
      %p249 = pneg %p243
      %p250 = scmp.eq.s32.totalorder %s36, 1
      %p251 = por %p249, %p250
      %p252 = scmp.ne.s32.totalorder %s244, %s247
      %p253 = scmp.eq.s32.totalorder %s36, 0
      %p254 = por %p252, %p253
      %p255 = scmp.ne.s32.totalorder %s244, %s247
      %p256 = scmp.eq.s32.totalorder %s41, 1
      %p257 = por %p255, %p256
      %p258 = scmp.ne.s32.totalorder %s247, %s248
      %p259 = scmp.eq.s32.totalorder %s41, 0
      %p260 = por %p258, %p259
      %p261 = scmp.ne.s32.totalorder %s247, %s248
      %p262 = scmp.eq.s32.totalorder %s42, 1
      %p263 = por %p261, %p262
      %p265 = scmp.ne.s32.totalorder %s248, %s264
      %p266 = scmp.eq.s32.totalorder %s42, 0
      %p267 = por %p265, %p266
      %s268 = ssub.s32 %s36, %s43
      %p269 = scmp.eq.s32.totalorder %s268, 0
      %s271 = sadd.s32 %s270, 1
      %s272 = scalar_select %p269, %s270, %s271
      %p275 = pneg %p269
      %p276 = scmp.eq.s32.totalorder %s36, 1
      %p277 = por %p275, %p276
      %p278 = scmp.ne.s32.totalorder %s270, %s273
      %p279 = scmp.eq.s32.totalorder %s36, 0
      %p280 = por %p278, %p279
      %p281 = scmp.ne.s32.totalorder %s270, %s273
      %p282 = scmp.eq.s32.totalorder %s41, 1
      %p283 = por %p281, %p282
      %p284 = scmp.ne.s32.totalorder %s273, %s274
      %p285 = scmp.eq.s32.totalorder %s41, 0
      %p286 = por %p284, %p285
      %p287 = scmp.ne.s32.totalorder %s273, %s274
      %p288 = scmp.eq.s32.totalorder %s42, 1
      %p289 = por %p287, %p288
      %p291 = scmp.ne.s32.totalorder %s274, %s290
      %p292 = scmp.eq.s32.totalorder %s42, 0
      %p293 = por %p291, %p292
      %s294 = ssub.s32 %s36, %s43
      %p295 = scmp.eq.s32.totalorder %s294, 0
      %s297 = sadd.s32 %s296, 1
      %s298 = scalar_select %p295, %s296, %s297
      %p301 = pneg %p295
      %p302 = scmp.eq.s32.totalorder %s36, 1
      %p303 = por %p301, %p302
      %p304 = scmp.ne.s32.totalorder %s296, %s299
      %p305 = scmp.eq.s32.totalorder %s36, 0
      %p306 = por %p304, %p305
      %p307 = scmp.ne.s32.totalorder %s296, %s299
      %p308 = scmp.eq.s32.totalorder %s41, 1
      %p309 = por %p307, %p308
      %p310 = scmp.ne.s32.totalorder %s299, %s300
      %p311 = scmp.eq.s32.totalorder %s41, 0
      %p312 = por %p310, %p311
      %p313 = scmp.ne.s32.totalorder %s299, %s300
      %p314 = scmp.eq.s32.totalorder %s42, 1
      %p315 = por %p313, %p314
      %p317 = scmp.ne.s32.totalorder %s300, %s316
      %p318 = scmp.eq.s32.totalorder %s42, 0
      %p319 = por %p317, %p318
      %s320 = ssub.s32 %s36, %s43
      %p321 = scmp.eq.s32.totalorder %s320, 0
      %s323 = sadd.s32 %s322, 1
      %s324 = scalar_select %p321, %s322, %s323
      %p327 = pneg %p321
      %p328 = scmp.eq.s32.totalorder %s36, 1
      %p329 = por %p327, %p328
      %p330 = scmp.ne.s32.totalorder %s322, %s325
      %p331 = scmp.eq.s32.totalorder %s36, 0
      %p332 = por %p330, %p331
      %p333 = scmp.ne.s32.totalorder %s322, %s325
      %p334 = scmp.eq.s32.totalorder %s41, 1
      %p335 = por %p333, %p334
      %p336 = scmp.ne.s32.totalorder %s325, %s326
      %p337 = scmp.eq.s32.totalorder %s41, 0
      %p338 = por %p336, %p337
      %p339 = scmp.ne.s32.totalorder %s325, %s326
      %p340 = scmp.eq.s32.totalorder %s42, 1
      %p341 = por %p339, %p340
      %p343 = scmp.ne.s32.totalorder %s326, %s342
      %p344 = scmp.eq.s32.totalorder %s42, 0
      %p345 = por %p343, %p344
      %s346 = ssub.s32 %s36, %s43
      %p347 = scmp.eq.s32.totalorder %s346, 0
      %s349 = sadd.s32 %s348, 1
      %s350 = scalar_select %p347, %s348, %s349
      %p353 = pneg %p347
      %p354 = scmp.eq.s32.totalorder %s36, 1
      %p355 = por %p353, %p354
      %p356 = scmp.ne.s32.totalorder %s348, %s351
      %p357 = scmp.eq.s32.totalorder %s36, 0
      %p358 = por %p356, %p357
      %p359 = scmp.ne.s32.totalorder %s348, %s351
      %p360 = scmp.eq.s32.totalorder %s41, 1
      %p361 = por %p359, %p360
      %p362 = scmp.ne.s32.totalorder %s351, %s352
      %p363 = scmp.eq.s32.totalorder %s41, 0
      %p364 = por %p362, %p363
      %p365 = scmp.ne.s32.totalorder %s351, %s352
      %p366 = scmp.eq.s32.totalorder %s42, 1
      %p367 = por %p365, %p366
      %p369 = scmp.ne.s32.totalorder %s352, %s368
      %p370 = scmp.eq.s32.totalorder %s42, 0
      %p371 = por %p369, %p370
      %s372 = ssub.s32 %s36, %s43
      %p373 = scmp.eq.s32.totalorder %s372, 0
      %s375 = sadd.s32 %s374, 1
      %s376 = scalar_select %p373, %s374, %s375
      %p379 = pneg %p373
      %p380 = scmp.eq.s32.totalorder %s36, 1
      %p381 = por %p379, %p380
      %p382 = scmp.ne.s32.totalorder %s374, %s377
      %p383 = scmp.eq.s32.totalorder %s36, 0
      %p384 = por %p382, %p383
      %p385 = scmp.ne.s32.totalorder %s374, %s377
      %p386 = scmp.eq.s32.totalorder %s41, 1
      %p387 = por %p385, %p386
      %p388 = scmp.ne.s32.totalorder %s377, %s378
      %p389 = scmp.eq.s32.totalorder %s41, 0
      %p390 = por %p388, %p389
      %p391 = scmp.ne.s32.totalorder %s377, %s378
      %p392 = scmp.eq.s32.totalorder %s42, 1
      %p393 = por %p391, %p392
      %p395 = scmp.ne.s32.totalorder %s378, %s394
      %p396 = scmp.eq.s32.totalorder %s42, 0
      %p397 = por %p395, %p396
      %s399 = sadd.s32 %s398, 1
      %p402 = scmp.eq.s32.totalorder %s36, 1
      %p403 = scmp.ne.s32.totalorder %s398, %s400
      %p404 = scmp.eq.s32.totalorder %s36, 0
      %p405 = por %p403, %p404
      %p406 = scmp.ne.s32.totalorder %s398, %s400
      %p407 = scmp.eq.s32.totalorder %s41, 1
      %p408 = por %p406, %p407
      %p409 = scmp.ne.s32.totalorder %s400, %s401
      %p410 = scmp.eq.s32.totalorder %s41, 0
      %p411 = por %p409, %p410
      %p412 = scmp.ne.s32.totalorder %s400, %s401
      %p413 = scmp.eq.s32.totalorder %s42, 1
      %p414 = por %p412, %p413
      %p416 = scmp.ne.s32.totalorder %s401, %s415
      %p417 = scmp.eq.s32.totalorder %s42, 0
      %p418 = por %p416, %p417
      %s420 = sadd.s32 %s419, 1
      %p423 = scmp.eq.s32.totalorder %s36, 1
      %p424 = scmp.ne.s32.totalorder %s419, %s421
      %p425 = scmp.eq.s32.totalorder %s36, 0
      %p426 = por %p424, %p425
      %p427 = scmp.ne.s32.totalorder %s419, %s421
      %p428 = scmp.eq.s32.totalorder %s41, 1
      %p429 = por %p427, %p428
      %p430 = scmp.ne.s32.totalorder %s421, %s422
      %p431 = scmp.eq.s32.totalorder %s41, 0
      %p432 = por %p430, %p431
      %p433 = scmp.ne.s32.totalorder %s421, %s422
      %p434 = scmp.eq.s32.totalorder %s42, 1
      %p435 = por %p433, %p434
      %p437 = scmp.ne.s32.totalorder %s422, %s436
      %p438 = scmp.eq.s32.totalorder %s42, 0
      %p439 = por %p437, %p438
      %s441 = sadd.s32 %s440, 1
      %p444 = scmp.eq.s32.totalorder %s36, 1
      %p445 = scmp.ne.s32.totalorder %s440, %s442
      %p446 = scmp.eq.s32.totalorder %s36, 0
      %p447 = por %p445, %p446
      %p448 = scmp.ne.s32.totalorder %s440, %s442
      %p449 = scmp.eq.s32.totalorder %s41, 1
      %p450 = por %p448, %p449
      %p451 = scmp.ne.s32.totalorder %s442, %s443
      %p452 = scmp.eq.s32.totalorder %s41, 0
      %p453 = por %p451, %p452
      %p454 = scmp.ne.s32.totalorder %s442, %s443
      %p455 = scmp.eq.s32.totalorder %s42, 1
      %p456 = por %p454, %p455
      %p458 = scmp.ne.s32.totalorder %s443, %s457
      %p459 = scmp.eq.s32.totalorder %s42, 0
      %p460 = por %p458, %p459
      %s462 = sadd.s32 %s461, 1
      %p465 = scmp.eq.s32.totalorder %s36, 1
      %p466 = scmp.ne.s32.totalorder %s461, %s463
      %p467 = scmp.eq.s32.totalorder %s36, 0
      %p468 = por %p466, %p467
      %p469 = scmp.ne.s32.totalorder %s461, %s463
      %p470 = scmp.eq.s32.totalorder %s41, 1
      %p471 = por %p469, %p470
      %p472 = scmp.ne.s32.totalorder %s463, %s464
      %p473 = scmp.eq.s32.totalorder %s41, 0
      %p474 = por %p472, %p473
      %p475 = scmp.ne.s32.totalorder %s463, %s464
      %p476 = scmp.eq.s32.totalorder %s42, 1
      %p477 = por %p475, %p476
      %p479 = scmp.ne.s32.totalorder %s464, %s478
      %p480 = scmp.eq.s32.totalorder %s42, 0
      %p481 = por %p479, %p480
      %s483 = sadd.s32 %s482, 1
      %p486 = scmp.eq.s32.totalorder %s36, 1
      %p487 = scmp.ne.s32.totalorder %s482, %s484
      %p488 = scmp.eq.s32.totalorder %s36, 0
      %p489 = por %p487, %p488
      %p490 = scmp.ne.s32.totalorder %s482, %s484
      %p491 = scmp.eq.s32.totalorder %s41, 1
      %p492 = por %p490, %p491
      %p493 = scmp.ne.s32.totalorder %s484, %s485
      %p494 = scmp.eq.s32.totalorder %s41, 0
      %p495 = por %p493, %p494
      %p496 = scmp.ne.s32.totalorder %s484, %s485
      %p497 = scmp.eq.s32.totalorder %s42, 1
      %p498 = por %p496, %p497
      %p500 = scmp.ne.s32.totalorder %s485, %s499
      %p501 = scmp.eq.s32.totalorder %s42, 0
      %p502 = por %p500, %p501
      %s503 = ssub.s32 %s36, %s43
      %p504 = scmp.eq.s32.totalorder %s503, 0
      %s506 = sadd.s32 %s505, 1
      %s507 = scalar_select %p504, %s505, %s506
      %p510 = pneg %p504
      %p511 = scmp.eq.s32.totalorder %s36, 1
      %p512 = por %p510, %p511
      %p513 = scmp.ne.s32.totalorder %s505, %s508
      %p514 = scmp.eq.s32.totalorder %s36, 0
      %p515 = por %p513, %p514
      %p516 = scmp.ne.s32.totalorder %s505, %s508
      %p517 = scmp.eq.s32.totalorder %s41, 1
      %p518 = por %p516, %p517
      %p519 = scmp.ne.s32.totalorder %s508, %s509
      %p520 = scmp.eq.s32.totalorder %s41, 0
      %p521 = por %p519, %p520
      %p522 = scmp.ne.s32.totalorder %s508, %s509
      %p523 = scmp.eq.s32.totalorder %s42, 1
      %p524 = por %p522, %p523
      %p526 = scmp.ne.s32.totalorder %s509, %s525
      %p527 = scmp.eq.s32.totalorder %s42, 0
      %p528 = por %p526, %p527
      %s530 = sadd.s32 %s529, 1
      %p533 = scmp.eq.s32.totalorder %s36, 1
      %p534 = scmp.ne.s32.totalorder %s529, %s531
      %p535 = scmp.eq.s32.totalorder %s36, 0
      %p536 = por %p534, %p535
      %p537 = scmp.ne.s32.totalorder %s529, %s531
      %p538 = scmp.eq.s32.totalorder %s41, 1
      %p539 = por %p537, %p538
      %p540 = scmp.ne.s32.totalorder %s531, %s532
      %p541 = scmp.eq.s32.totalorder %s41, 0
      %p542 = por %p540, %p541
      %p543 = scmp.ne.s32.totalorder %s531, %s532
      %p544 = scmp.eq.s32.totalorder %s42, 1
      %p545 = por %p543, %p544
      %p547 = scmp.ne.s32.totalorder %s532, %s546
      %p548 = scmp.eq.s32.totalorder %s42, 0
      %p549 = por %p547, %p548
      %p550 = scmp.le.s32.totalorder 1, %s36
      %p551 = scmp.lt.s32.totalorder %s36, 3
      %p552 = pnand %p550, %p551
      %p553 = pneg %p552
      // Predicated region
      $region9: #{_bert_forward_impl.1} parent=5 // pred_check
        _
      $region10: #{_bert_forward_impl.1} parent=5 // pred_check_branch
        %555 = sbr.rel (%p552) target = $region12
      $region11: #{_bert_forward_impl.1} parent=5 // pred_region
        %s556 = ssub.s32 %s36, 1
        // Predicated region
        $region13: #{_bert_forward_impl.1} parent=11 // pred_check
          %p557 = pneg %p57
        $region14: #{_bert_forward_impl.1} parent=11 // pred_check_branch
          %559 = sbr.rel (%p557) target = $region16
        $region15: #{_bert_forward_impl.1} parent=11 // pred_region
          _
        $region16: #{_bert_forward_impl.1} parent=11 // pred_fallthru
          _
        // Predicated region
        $region17: #{_bert_forward_impl.1} parent=11 // pred_check
          %p560 = pneg %p78
        $region18: #{_bert_forward_impl.1} parent=11 // pred_check_branch
          %562 = sbr.rel (%p560) target = $region20
        $region19: #{_bert_forward_impl.1} parent=11 // pred_region
          _
        $region20: #{_bert_forward_impl.1} parent=11 // pred_fallthru
          _
        // Predicated region
        $region21: #{_bert_forward_impl.1} parent=11 // pred_check
          %p563 = pneg %p411
        $region22: #{_bert_forward_impl.1} parent=11 // pred_check_branch
          %565 = sbr.rel (%p563) target = $region24
        $region23: #{_bert_forward_impl.1} parent=11 // pred_region
          _
        $region24: #{_bert_forward_impl.1} parent=11 // pred_fallthru
          _
        // Predicated region
        $region25: #{_bert_forward_impl.1} parent=11 // pred_check
          %p566 = pneg %p432
        $region26: #{_bert_forward_impl.1} parent=11 // pred_check_branch
          %568 = sbr.rel (%p566) target = $region28
        $region27: #{_bert_forward_impl.1} parent=11 // pred_region
          _
        $region28: #{_bert_forward_impl.1} parent=11 // pred_fallthru
          _
        // Predicated region
        $region29: #{_bert_forward_impl.1} parent=11 // pred_check
          %p569 = pneg %p453
        $region30: #{_bert_forward_impl.1} parent=11 // pred_check_branch
          %571 = sbr.rel (%p569) target = $region32
        $region31: #{_bert_forward_impl.1} parent=11 // pred_region
          %573 = vsyncadd [#allocation10], 0
          %s574 = sshll.u32 %s16, 4
          %s575 = int_to_ptr.hbm [resolvable:$true] %s574
          %s576 = sshll.u32 [#allocation9], 4
          %s577 = int_to_ptr.vmem [resolvable:$true] %s576
          %582 = dma.hbm_to_vmem [thread:$0]  %s575, 2048, %s577, [#allocation10], 128, 128, 8
        $region32: #{_bert_forward_impl.1} parent=11 // pred_fallthru
          _
        // Predicated region
        $region33: #{_bert_forward_impl.1} parent=11 // pred_check
          %p583 = pneg %p474
        $region34: #{_bert_forward_impl.1} parent=11 // pred_check_branch
          %585 = sbr.rel (%p583) target = $region36
        $region35: #{_bert_forward_impl.1} parent=11 // pred_region
          _
        $region36: #{_bert_forward_impl.1} parent=11 // pred_fallthru
          _
      $region12: #{_bert_forward_impl.1} parent=5 // pred_fallthru
        _
      %p586 = scmp.lt.s32.totalorder %s36, 2
      // Predicated region
      $region37: #{_bert_forward_impl.1} parent=5 // pred_check
        %p587 = pneg %p586
      $region38: #{_bert_forward_impl.1} parent=5 // pred_check_branch
        %589 = sbr.rel (%p587) target = $region40
      $region39: #{_bert_forward_impl.1} parent=5 // pred_region
        // Predicated region
        $region41: #{_bert_forward_impl.1} parent=39 // pred_check
          %p590 = pneg %p98
        $region42: #{_bert_forward_impl.1} parent=39 // pred_check_branch
          %592 = sbr.rel (%p590) target = $region44
        $region43: #{_bert_forward_impl.1} parent=39 // pred_region
          %s593 = sand.u32 %s88, 1
          %s594 = scalar_lea.sflag [#allocation4], %s593
          %s595 = sand.u32 %s88, 1
          %s596 = smul.addr %s595, 384
          %s597 = scalar_lea.vmem [#allocation3], %s596
          %599 = vsyncadd %s594, 0
          %s600 = smul.addr %s36, 48
          %s601 = smul.addr %s600, 8
          %s602 = scalar_lea.hbm %s2, %s601
          %s603 = sshll.u32 %s602, 4
          %s604 = int_to_ptr.hbm [resolvable:$true] %s603
          %s605 = sshll.u32 %s597, 4
          %s606 = int_to_ptr.vmem [resolvable:$true] %s605
          %611 = dma.hbm_to_vmem [thread:$0]  %s604, 6144, %s606, %s594, 384, 384, 24
        $region44: #{_bert_forward_impl.1} parent=39 // pred_fallthru
          _
        // Predicated region
        $region45: #{_bert_forward_impl.1} parent=39 // pred_check
          %p612 = pneg %p124
        $region46: #{_bert_forward_impl.1} parent=39 // pred_check_branch
          %614 = sbr.rel (%p612) target = $region48
        $region47: #{_bert_forward_impl.1} parent=39 // pred_region
          %p615 = scmp.lt.s32.totalorder %s36, 1
          %s616 = scalar_select %p615, %s36, 1
          %s617 = smul.addr %s616, 3
          %s618 = scalar_lea.vmem %s3, %s617
        $region48: #{_bert_forward_impl.1} parent=39 // pred_fallthru
          _
        // Predicated region
        $region49: #{_bert_forward_impl.1} parent=39 // pred_check
          %p619 = pneg %p150
        $region50: #{_bert_forward_impl.1} parent=39 // pred_check_branch
          %621 = sbr.rel (%p619) target = $region52
        $region51: #{_bert_forward_impl.1} parent=39 // pred_region
          %p622 = scmp.lt.s32.totalorder %s36, 1
          %s623 = scalar_select %p622, %s36, 1
          %s624 = smul.addr %s623, 16
          %s625 = smul.addr %s624, 8
          %s626 = scalar_lea.vmem %s4, %s625
        $region52: #{_bert_forward_impl.1} parent=39 // pred_fallthru
          _
        // Predicated region
        $region53: #{_bert_forward_impl.1} parent=39 // pred_check
          %p627 = pneg %p176
        $region54: #{_bert_forward_impl.1} parent=39 // pred_check_branch
          %629 = sbr.rel (%p627) target = $region56
        $region55: #{_bert_forward_impl.1} parent=39 // pred_region
          %p630 = scmp.lt.s32.totalorder %s36, 1
          %s631 = scalar_select %p630, %s36, 1
          %s632 = scalar_lea.vmem %s5, %s631
        $region56: #{_bert_forward_impl.1} parent=39 // pred_fallthru
          _
        // Predicated region
        $region57: #{_bert_forward_impl.1} parent=39 // pred_check
          %p633 = pneg %p202
        $region58: #{_bert_forward_impl.1} parent=39 // pred_check_branch
          %635 = sbr.rel (%p633) target = $region60
        $region59: #{_bert_forward_impl.1} parent=39 // pred_region
          %p636 = scmp.lt.s32.totalorder %s36, 1
          %s637 = scalar_select %p636, %s36, 1
          %s638 = scalar_lea.vmem %s6, %s637
        $region60: #{_bert_forward_impl.1} parent=39 // pred_fallthru
          _
        // Predicated region
        $region61: #{_bert_forward_impl.1} parent=39 // pred_check
          %p639 = pneg %p228
        $region62: #{_bert_forward_impl.1} parent=39 // pred_check_branch
          %641 = sbr.rel (%p639) target = $region64
        $region63: #{_bert_forward_impl.1} parent=39 // pred_region
          %p642 = scmp.lt.s32.totalorder %s36, 1
          %s643 = scalar_select %p642, %s36, 1
          %s644 = scalar_lea.vmem %s7, %s643
        $region64: #{_bert_forward_impl.1} parent=39 // pred_fallthru
          _
        // Predicated region
        $region65: #{_bert_forward_impl.1} parent=39 // pred_check
          %p645 = pneg %p254
        $region66: #{_bert_forward_impl.1} parent=39 // pred_check_branch
          %647 = sbr.rel (%p645) target = $region68
        $region67: #{_bert_forward_impl.1} parent=39 // pred_region
          %s648 = sand.u32 %s36, 1
          %s649 = scalar_lea.sflag [#allocation7], %s648
          %s650 = sand.u32 %s244, 1
          %s651 = smul.addr %s650, 256
          %s652 = scalar_lea.vmem [#allocation6], %s651
          %654 = vsyncadd %s649, 0
          %s655 = smul.addr %s36, 32
          %s656 = smul.addr %s655, 8
          %s657 = scalar_lea.hbm %s8, %s656
          %s658 = sshll.u32 %s657, 4
          %s659 = int_to_ptr.hbm [resolvable:$true] %s658
          %s660 = sshll.u32 %s652, 4
          %s661 = int_to_ptr.vmem [resolvable:$true] %s660
          %666 = dma.hbm_to_vmem [thread:$0]  %s659, 4096, %s661, %s649, 256, 256, 16
        $region68: #{_bert_forward_impl.1} parent=39 // pred_fallthru
          _
        // Predicated region
        $region69: #{_bert_forward_impl.1} parent=39 // pred_check
          %p667 = pneg %p280
        $region70: #{_bert_forward_impl.1} parent=39 // pred_check_branch
          %669 = sbr.rel (%p667) target = $region72
        $region71: #{_bert_forward_impl.1} parent=39 // pred_region
          %p670 = scmp.lt.s32.totalorder %s36, 1
          %s671 = scalar_select %p670, %s36, 1
          %s672 = smul.addr %s671, 2
          %s673 = scalar_lea.vmem %s9, %s672
        $region72: #{_bert_forward_impl.1} parent=39 // pred_fallthru
          _
        // Predicated region
        $region73: #{_bert_forward_impl.1} parent=39 // pred_check
          %p674 = pneg %p306
        $region74: #{_bert_forward_impl.1} parent=39 // pred_check_branch
          %676 = sbr.rel (%p674) target = $region76
        $region75: #{_bert_forward_impl.1} parent=39 // pred_region
          %s677 = sand.u32 %s36, 1
          %s678 = scalar_lea.sflag [#allocation7], %s677
          %s679 = sand.u32 %s296, 1
          %s680 = smul.addr %s679, 256
          %s681 = scalar_lea.vmem [#allocation8], %s680
          %683 = vsyncadd %s678, 0
          %s684 = smul.addr %s36, 32
          %s685 = smul.addr %s684, 8
          %s686 = scalar_lea.hbm %s10, %s685
          %s687 = sshll.u32 %s686, 4
          %s688 = int_to_ptr.hbm [resolvable:$true] %s687
          %s689 = sshll.u32 %s681, 4
          %s690 = int_to_ptr.vmem [resolvable:$true] %s689
          %695 = dma.hbm_to_vmem [thread:$0]  %s688, 4096, %s690, %s678, 128, 128, 8
        $region76: #{_bert_forward_impl.1} parent=39 // pred_fallthru
          _
        // Predicated region
        $region77: #{_bert_forward_impl.1} parent=39 // pred_check
          %p696 = pneg %p332
        $region78: #{_bert_forward_impl.1} parent=39 // pred_check_branch
          %698 = sbr.rel (%p696) target = $region80
        $region79: #{_bert_forward_impl.1} parent=39 // pred_region
          %p699 = scmp.lt.s32.totalorder %s36, 1
          %s700 = scalar_select %p699, %s36, 1
          %s701 = scalar_lea.vmem %s11, %s700
        $region80: #{_bert_forward_impl.1} parent=39 // pred_fallthru
          _
        // Predicated region
        $region81: #{_bert_forward_impl.1} parent=39 // pred_check
          %p702 = pneg %p358
        $region82: #{_bert_forward_impl.1} parent=39 // pred_check_branch
          %704 = sbr.rel (%p702) target = $region84
        $region83: #{_bert_forward_impl.1} parent=39 // pred_region
          %p705 = scmp.lt.s32.totalorder %s36, 1
          %s706 = scalar_select %p705, %s36, 1
          %s707 = scalar_lea.vmem %s12, %s706
        $region84: #{_bert_forward_impl.1} parent=39 // pred_fallthru
          _
        // Predicated region
        $region85: #{_bert_forward_impl.1} parent=39 // pred_check
          %p708 = pneg %p384
        $region86: #{_bert_forward_impl.1} parent=39 // pred_check_branch
          %710 = sbr.rel (%p708) target = $region88
        $region87: #{_bert_forward_impl.1} parent=39 // pred_region
          %p711 = scmp.lt.s32.totalorder %s36, 1
          %s712 = scalar_select %p711, %s36, 1
          %s713 = scalar_lea.vmem %s13, %s712
        $region88: #{_bert_forward_impl.1} parent=39 // pred_fallthru
          _
      $region40: #{_bert_forward_impl.1} parent=5 // pred_fallthru
        _
      %p714 = scmp.le.s32.totalorder 1, %s36
      %p715 = scmp.lt.s32.totalorder %s36, 3
      %p716 = pnand %p714, %p715
      %p717 = pneg %p716
      // Predicated region
      $region89: #{_bert_forward_impl.1} parent=5 // pred_check
        _
      $region90: #{_bert_forward_impl.1} parent=5 // pred_check_branch
        %719 = sbr.rel (%p716) target = $region92
      $region91: #{_bert_forward_impl.1} parent=5 // pred_region
        %s720 = ssub.s32 %s36, 1
        %s721 = sand.u32 %s91, 1
        %s722 = scalar_lea.sflag [#allocation4], %s721
        %s723 = sand.u32 %s91, 1
        %s724 = smul.addr %s723, 384
        %s725 = scalar_lea.vmem [#allocation3], %s724
        // Predicated region
        $region93: #{_bert_forward_impl.1} parent=91 // pred_check
          %p726 = pneg %p104
        $region94: #{_bert_forward_impl.1} parent=91 // pred_check_branch
          %728 = sbr.rel (%p726) target = $region96
        $region95: #{_bert_forward_impl.1} parent=91 // pred_region
          %730 = dma.done %s722, 6144
        $region96: #{_bert_forward_impl.1} parent=91 // pred_fallthru
          _
        %s731 = sand.u32 %s41, 1
        %s732 = scalar_lea.sflag [#allocation7], %s731
        %s733 = sand.u32 %s247, 1
        %s734 = smul.addr %s733, 256
        %s735 = scalar_lea.vmem [#allocation6], %s734
        // Predicated region
        $region97: #{_bert_forward_impl.1} parent=91 // pred_check
          %p736 = pneg %p260
        $region98: #{_bert_forward_impl.1} parent=91 // pred_check_branch
          %738 = sbr.rel (%p736) target = $region100
        $region99: #{_bert_forward_impl.1} parent=91 // pred_region
          %740 = dma.done %s732, 4096
        $region100: #{_bert_forward_impl.1} parent=91 // pred_fallthru
          _
        %s741 = sand.u32 %s41, 1
        %s742 = scalar_lea.sflag [#allocation7], %s741
        %s743 = sand.u32 %s299, 1
        %s744 = smul.addr %s743, 256
        %s745 = scalar_lea.vmem [#allocation8], %s744
        // Predicated region
        $region101: #{_bert_forward_impl.1} parent=91 // pred_check
          %p746 = pneg %p312
        $region102: #{_bert_forward_impl.1} parent=91 // pred_check_branch
          %748 = sbr.rel (%p746) target = $region104
        $region103: #{_bert_forward_impl.1} parent=91 // pred_region
          %750 = dma.done %s742, 4096
        $region104: #{_bert_forward_impl.1} parent=91 // pred_fallthru
          _
        // Predicated region
        $region105: #{_bert_forward_impl.1} parent=91 // pred_check
          %p751 = pneg %p453
        $region106: #{_bert_forward_impl.1} parent=91 // pred_check_branch
          %753 = sbr.rel (%p751) target = $region108
        $region107: #{_bert_forward_impl.1} parent=91 // pred_region
          %755 = dma.done [#allocation10], 2048
        $region108: #{_bert_forward_impl.1} parent=91 // pred_fallthru
          _
        %p756 = pneg %p57
        %p757 = pneg %p54
        %p758 = pneg %p78
        %p759 = pneg %p75
        %s760 = sand.u32 %s91, 1
        %s761 = scalar_lea.sflag [#allocation4], %s760
        %s762 = sand.u32 %s91, 1
        %s763 = smul.addr %s762, 384
        %s764 = scalar_lea.vmem [#allocation3], %s763
        %p765 = pneg %p104
        %p766 = pneg %p101
        %p767 = scmp.lt.s32.totalorder %s41, 1
        %s768 = scalar_select %p767, %s41, 1
        %s769 = smul.addr %s768, 3
        %s770 = scalar_lea.vmem %s3, %s769
        %p771 = pneg %p130
        %p772 = pneg %p127
        %p773 = scmp.lt.s32.totalorder %s41, 1
        %s774 = scalar_select %p773, %s41, 1
        %s775 = smul.addr %s774, 16
        %s776 = smul.addr %s775, 8
        %s777 = scalar_lea.vmem %s4, %s776
        %p778 = pneg %p156
        %p779 = pneg %p153
        %p780 = scmp.lt.s32.totalorder %s41, 1
        %s781 = scalar_select %p780, %s41, 1
        %s782 = scalar_lea.vmem %s5, %s781
        %p783 = pneg %p182
        %p784 = pneg %p179
        %p785 = scmp.lt.s32.totalorder %s41, 1
        %s786 = scalar_select %p785, %s41, 1
        %s787 = scalar_lea.vmem %s6, %s786
        %p788 = pneg %p208
        %p789 = pneg %p205
        %p790 = scmp.lt.s32.totalorder %s41, 1
        %s791 = scalar_select %p790, %s41, 1
        %s792 = scalar_lea.vmem %s7, %s791
        %p793 = pneg %p234
        %p794 = pneg %p231
        %s795 = sand.u32 %s41, 1
        %s796 = scalar_lea.sflag [#allocation7], %s795
        %s797 = sand.u32 %s247, 1
        %s798 = smul.addr %s797, 256
        %s799 = scalar_lea.vmem [#allocation6], %s798
        %p800 = pneg %p260
        %p801 = pneg %p257
        %p802 = scmp.lt.s32.totalorder %s41, 1
        %s803 = scalar_select %p802, %s41, 1
        %s804 = smul.addr %s803, 2
        %s805 = scalar_lea.vmem %s9, %s804
        %p806 = pneg %p286
        %p807 = pneg %p283
        %s808 = sand.u32 %s41, 1
        %s809 = scalar_lea.sflag [#allocation7], %s808
        %s810 = sand.u32 %s299, 1
        %s811 = smul.addr %s810, 256
        %s812 = scalar_lea.vmem [#allocation8], %s811
        %p813 = pneg %p312
        %p814 = pneg %p309
        %p815 = scmp.lt.s32.totalorder %s41, 1
        %s816 = scalar_select %p815, %s41, 1
        %s817 = scalar_lea.vmem %s11, %s816
        %p818 = pneg %p338
        %p819 = pneg %p335
        %p820 = scmp.lt.s32.totalorder %s41, 1
        %s821 = scalar_select %p820, %s41, 1
        %s822 = scalar_lea.vmem %s12, %s821
        %p823 = pneg %p364
        %p824 = pneg %p361
        %p825 = scmp.lt.s32.totalorder %s41, 1
        %s826 = scalar_select %p825, %s41, 1
        %s827 = scalar_lea.vmem %s13, %s826
        %p828 = pneg %p390
        %p829 = pneg %p387
        %p830 = pneg %p411
        %p831 = pneg %p408
        %p832 = pneg %p432
        %p833 = pneg %p429
        %p834 = pneg %p453
        %p835 = pneg %p450
        %p836 = pneg %p474
        %p837 = pneg %p471
        %p838 = pneg %p495
        %p839 = pneg %p492
        %p840 = pneg %p521
        %p841 = pneg %p518
        %p842 = scmp.lt.s32.totalorder %s41, 1
        %s843 = scalar_select %p842, %s41, 1
        %s844 = smul.addr %s843, 2
        %s845 = smul.addr %s844, 8
        %s846 = scalar_lea.vmem %s19, %s845
        %p847 = pneg %p542
        %p848 = pneg %p539
        %p849 = scmp.lt.s32.totalorder %s41, 1
        %s850 = scalar_select %p849, %s41, 1
        %s851 = smul.addr %s850, 3
        %s852 = scalar_lea.vmem %s3, %s851
        %p853 = scmp.lt.s32.totalorder %s41, 1
        %s854 = scalar_select %p853, %s41, 1
        %s855 = smul.addr %s854, 16
        %s856 = smul.addr %s855, 8
        %s857 = scalar_lea.vmem %s4, %s856
        %p858 = scmp.lt.s32.totalorder %s41, 1
        %s859 = scalar_select %p858, %s41, 1
        %s860 = scalar_lea.vmem %s5, %s859
        %p861 = scmp.lt.s32.totalorder %s41, 1
        %s862 = scalar_select %p861, %s41, 1
        %s863 = scalar_lea.vmem %s6, %s862
        %p864 = scmp.lt.s32.totalorder %s41, 1
        %s865 = scalar_select %p864, %s41, 1
        %s866 = scalar_lea.vmem %s7, %s865
        %p867 = scmp.lt.s32.totalorder %s41, 1
        %s868 = scalar_select %p867, %s41, 1
        %s869 = smul.addr %s868, 2
        %s870 = scalar_lea.vmem %s9, %s869
        %p871 = scmp.lt.s32.totalorder %s41, 1
        %s872 = scalar_select %p871, %s41, 1
        %s873 = scalar_lea.vmem %s11, %s872
        %p874 = scmp.lt.s32.totalorder %s41, 1
        %s875 = scalar_select %p874, %s41, 1
        %s876 = scalar_lea.vmem %s12, %s875
        %p877 = scmp.lt.s32.totalorder %s41, 1
        %s878 = scalar_select %p877, %s41, 1
        %s879 = scalar_lea.vmem %s13, %s878
        %p880 = scmp.lt.s32.totalorder %s41, 1
        %s881 = scalar_select %p880, %s41, 1
        %s882 = smul.addr %s881, 2
        %s883 = smul.addr %s882, 8
        %s884 = scalar_lea.vmem %s19, %s883
        %p885 = scmp.eq.s32.totalorder %s41, 0
        // Predicated region
        $region109: #{_bert_forward_impl.1} parent=91 // pred_check
          %p886 = pneg %p885
        $region110: #{_bert_forward_impl.1} parent=91 // pred_check_branch
          %888 = sbr.rel (%p886) target = $region112
        $region111: #{_bert_forward_impl.1} parent=91 // pred_region
          %v889 = vld [vmem:[%s0] sm:$0xff]
          %v890 = vld [vmem:[%s0 + $0x8] sm:$0xff]
          %v891 = vld [vmem:[%s14] sm:$0x1]
          %v892 = vld [vmem:[%s15] sm:$0x1]
          %893 = vadd.xlane.f32.xlu0 %v889
          %v894 = vpop.xlane.xlu0 %893
          %895 = vadd.xlane.f32.xlu0 %v890
          %v896 = vpop.xlane.xlu0 %895
          %v897 = vrcp.pop 128.0
          %v898 = vmul.f32 128.0, %v897
          %v899 = vsub.f32 1.0, %v898
          %v900 = vmul.f32 %v897, %v899
          %v901 = vadd.f32 %v897, %v900
          %vm902 = vweird.f32 %v897
          %v903 = vsel %vm902, %v897, %v901
          %v904 = vmul.f32 %v894, %v903
          %v905 = vmul.f32 %v896, %v903
          %v906 = vsub.f32 %v889, %v904
          %v907 = vsub.f32 %v890, %v905
          %v908 = vmul.f32 %v906, %v906
          %v909 = vmul.f32 %v907, %v907
          %910 = vadd.xlane.f32.xlu0 %v908
          %v911 = vpop.xlane.xlu0 %910
          %912 = vadd.xlane.f32.xlu0 %v909
          %v913 = vpop.xlane.xlu0 %912
          %v914 = vmul.f32 %v911, %v903
          %v915 = vmul.f32 %v913, %v903
          %v916 = vadd.f32 %v914, 1e-12
          %v917 = vadd.f32 %v915, 1e-12
          %v918 = vrsqrt.pop %v916
          %v919 = vmul.f32 %v918, %v916
          %v920 = vmul.f32 %v919, %v918
          %v921 = vmul.f32 0.5, %v920
          %v922 = vsub.f32 1.5, %v921
          %v923 = vmul.f32 %v918, %v922
          %vm924 = vweird.f32 %v916
          %vm925 = vweird.f32 %v918
          %vm926 = vmor %vm924, %vm925
          %v927 = vsel %vm926, %v918, %v923
          %v928 = vrsqrt.pop %v917
          %v929 = vmul.f32 %v928, %v917
          %v930 = vmul.f32 %v929, %v928
          %v931 = vmul.f32 0.5, %v930
          %v932 = vsub.f32 1.5, %v931
          %v933 = vmul.f32 %v928, %v932
          %vm934 = vweird.f32 %v917
          %vm935 = vweird.f32 %v928
          %vm936 = vmor %vm934, %vm935
          %v937 = vsel %vm936, %v928, %v933
          %v938 = vmul.f32 %v906, %v927
          %v939 = vmul.f32 %v907, %v937
          %v941 = vperm.slane %v891, 0
          %v943 = vmul.f32 %v938, %v941
          %v944 = vmul.f32 %v939, %v941
          %v946 = vperm.slane %v892, 0
          %v948 = vadd.f32 %v943, %v946
          %v949 = vadd.f32 %v944, %v946
          %950 = vst [vmem:[#allocation2] sm:$0xff] %v948
          %951 = vst [vmem:[#allocation2 + $0x8] sm:$0xff] %v949
          %952 = vst [vmem:[#allocation11] sm:$0xff] %v948
          %953 = vst [vmem:[#allocation11 + $0x8] sm:$0xff] %v949
        $region112: #{_bert_forward_impl.1} parent=91 // pred_fallthru
          _
        %v954 = vld [vmem:[#allocation2] sm:$0xff]
        %v955 = vld [vmem:[#allocation2 + $0x8] sm:$0xff]
        %v956 = vld [vmem:[%s1] sm:$0x3]
        %v957 = vld [vmem:[%s725] sm:$0xff]
        %v958 = vld [vmem:[%s725 + $0x8] sm:$0xff]
        %v959 = vld [vmem:[%s725 + $0x10] sm:$0xff]
        %v960 = vld [vmem:[%s725 + $0x18] sm:$0xff]
        %v961 = vld [vmem:[%s725 + $0x20] sm:$0xff]
        %v962 = vld [vmem:[%s725 + $0x28] sm:$0xff]
        %v963 = vld [vmem:[%s725 + $0x30] sm:$0xff]
        %v964 = vld [vmem:[%s725 + $0x38] sm:$0xff]
        %v965 = vld [vmem:[%s725 + $0x40] sm:$0xff]
        %v966 = vld [vmem:[%s725 + $0x48] sm:$0xff]
        %v967 = vld [vmem:[%s725 + $0x50] sm:$0xff]
        %v968 = vld [vmem:[%s725 + $0x58] sm:$0xff]
        %v969 = vld [vmem:[%s725 + $0x60] sm:$0xff]
        %v970 = vld [vmem:[%s725 + $0x68] sm:$0xff]
        %v971 = vld [vmem:[%s725 + $0x70] sm:$0xff]
        %v972 = vld [vmem:[%s725 + $0x78] sm:$0xff]
        %v973 = vld [vmem:[%s725 + $0x80] sm:$0xff]
        %v974 = vld [vmem:[%s725 + $0x88] sm:$0xff]
        %v975 = vld [vmem:[%s725 + $0x90] sm:$0xff]
        %v976 = vld [vmem:[%s725 + $0x98] sm:$0xff]
        %v977 = vld [vmem:[%s725 + $0xa0] sm:$0xff]
        %v978 = vld [vmem:[%s725 + $0xa8] sm:$0xff]
        %v979 = vld [vmem:[%s725 + $0xb0] sm:$0xff]
        %v980 = vld [vmem:[%s725 + $0xb8] sm:$0xff]
        %v981 = vld [vmem:[%s725 + $0xc0] sm:$0xff]
        %v982 = vld [vmem:[%s725 + $0xc8] sm:$0xff]
        %v983 = vld [vmem:[%s725 + $0xd0] sm:$0xff]
        %v984 = vld [vmem:[%s725 + $0xd8] sm:$0xff]
        %v985 = vld [vmem:[%s725 + $0xe0] sm:$0xff]
        %v986 = vld [vmem:[%s725 + $0xe8] sm:$0xff]
        %v987 = vld [vmem:[%s725 + $0xf0] sm:$0xff]
        %v988 = vld [vmem:[%s725 + $0xf8] sm:$0xff]
        %v989 = vld [vmem:[%s725 + $0x100] sm:$0xff]
        %v990 = vld [vmem:[%s725 + $0x108] sm:$0xff]
        %v991 = vld [vmem:[%s725 + $0x110] sm:$0xff]
        %v992 = vld [vmem:[%s725 + $0x118] sm:$0xff]
        %v993 = vld [vmem:[%s725 + $0x120] sm:$0xff]
        %v994 = vld [vmem:[%s725 + $0x128] sm:$0xff]
        %v995 = vld [vmem:[%s725 + $0x130] sm:$0xff]
        %v996 = vld [vmem:[%s725 + $0x138] sm:$0xff]
        %v997 = vld [vmem:[%s725 + $0x140] sm:$0xff]
        %v998 = vld [vmem:[%s725 + $0x148] sm:$0xff]
        %v999 = vld [vmem:[%s725 + $0x150] sm:$0xff]
        %v1000 = vld [vmem:[%s725 + $0x158] sm:$0xff]
        %v1001 = vld [vmem:[%s725 + $0x160] sm:$0xff]
        %v1002 = vld [vmem:[%s725 + $0x168] sm:$0xff]
        %v1003 = vld [vmem:[%s725 + $0x170] sm:$0xff]
        %v1004 = vld [vmem:[%s725 + $0x178] sm:$0xff]
        %v1005 = vld [vmem:[%s852] sm:$0x7]
        %v1007 = vperm.slane %v1005, 0
        %v1008 = vperm.slane %v1005, 1
        %v1009 = vperm.slane %v1005, 2
        %1013 = vmatpush.msra.mxu0 %v1002
        %1014 = vmatpush.msra.mxu0 %v999
        %1015 = vmatpush.msra.mxu0 %v996
        %1016 = vmatpush.msra.mxu0 %v993
        %1017 = vmatpush.msra.mxu0 %v990
        %1018 = vmatpush.msra.mxu0 %v987
        %1019 = vmatpush.msra.mxu0 %v984
        %1020 = vmatpush.msra.mxu0 %v981
        %1021 = vmatpush.msra.mxu0 %v978
        %1022 = vmatpush.msra.mxu0 %v975
        %1023 = vmatpush.msra.mxu0 %v972
        %1024 = vmatpush.msra.mxu0 %v969
        %1025 = vmatpush.msra.mxu0 %v966
        %1026 = vmatpush.msra.mxu0 %v963
        %1027 = vmatpush.msra.mxu0 %v960
        %1028 = vmatpush.msra.mxu0 %v957
        %1029 = vmatmul.f32.gmra.mxu0 %v954
        %v1030 = vpop.f32.mrf.mxu0
        %v1031 = vadd.f32 %v1007, %v1030
        %1032 = vmatmul.f32.gmra.mxu0 %v955
        %v1033 = vpop.f32.mrf.mxu0
        %v1034 = vadd.f32 %v1007, %v1033
        %1035 = vdwg.mxu0
        %1036 = vmatpush.msra.mxu0 %v1003
        %1037 = vmatpush.msra.mxu0 %v1000
        %1038 = vmatpush.msra.mxu0 %v997
        %1039 = vmatpush.msra.mxu0 %v994
        %1040 = vmatpush.msra.mxu0 %v991
        %1041 = vmatpush.msra.mxu0 %v988
        %1042 = vmatpush.msra.mxu0 %v985
        %1043 = vmatpush.msra.mxu0 %v982
        %1044 = vmatpush.msra.mxu0 %v979
        %1045 = vmatpush.msra.mxu0 %v976
        %1046 = vmatpush.msra.mxu0 %v973
        %1047 = vmatpush.msra.mxu0 %v970
        %1048 = vmatpush.msra.mxu0 %v967
        %1049 = vmatpush.msra.mxu0 %v964
        %1050 = vmatpush.msra.mxu0 %v961
        %1051 = vmatpush.msra.mxu0 %v958
        %1052 = vmatmul.f32.gmra.mxu0 %v954
        %v1053 = vpop.f32.mrf.mxu0
        %v1054 = vadd.f32 %v1008, %v1053
        %1055 = vmatmul.f32.gmra.mxu0 %v955
        %v1056 = vpop.f32.mrf.mxu0
        %v1057 = vadd.f32 %v1008, %v1056
        %1058 = vdwg.mxu0
        %1059 = vmatpush.msra.mxu0 %v1004
        %1060 = vmatpush.msra.mxu0 %v1001
        %1061 = vmatpush.msra.mxu0 %v998
        %1062 = vmatpush.msra.mxu0 %v995
        %1063 = vmatpush.msra.mxu0 %v992
        %1064 = vmatpush.msra.mxu0 %v989
        %1065 = vmatpush.msra.mxu0 %v986
        %1066 = vmatpush.msra.mxu0 %v983
        %1067 = vmatpush.msra.mxu0 %v980
        %1068 = vmatpush.msra.mxu0 %v977
        %1069 = vmatpush.msra.mxu0 %v974
        %1070 = vmatpush.msra.mxu0 %v971
        %1071 = vmatpush.msra.mxu0 %v968
        %1072 = vmatpush.msra.mxu0 %v965
        %1073 = vmatpush.msra.mxu0 %v962
        %1074 = vmatpush.msra.mxu0 %v959
        %1075 = vmatmul.f32.gmra.mxu0 %v954
        %v1076 = vpop.f32.mrf.mxu0
        %v1077 = vadd.f32 %v1009, %v1076
        %1078 = vmatmul.f32.gmra.mxu0 %v955
        %v1079 = vpop.f32.mrf.mxu0
        %v1080 = vadd.f32 %v1009, %v1079
        %1081 = vdwg.mxu0
        %vm1082 = vcmask 261120
        %v1084 = vsel %vm1082, %v1031, 0
        %v1087 = vsel %vm1082, %v1054, 0
        %1089 = vmatpush.xpose.msra.mxu0 0.0
        %1090 = vmatpush.xpose.msra.mxu0 0.0
        %1091 = vmatpush.xpose.msra.mxu0 0.0
        %1092 = vmatpush.xpose.msra.mxu0 0.0
        %1093 = vmatpush.xpose.msra.mxu0 0.0
        %1094 = vmatpush.xpose.msra.mxu0 0.0
        %1095 = vmatpush.xpose.msra.mxu0 0.0
        %1096 = vmatpush.xpose.msra.mxu0 0.0
        %1097 = vmatpush.xpose.msra.mxu0 0.0
        %1098 = vmatpush.xpose.msra.mxu0 0.0
        %1099 = vmatpush.xpose.msra.mxu0 0.0
        %1100 = vmatpush.xpose.msra.mxu0 0.0
        %1101 = vmatpush.xpose.msra.mxu0 0.0
        %1102 = vmatpush.xpose.msra.mxu0 0.0
        %1103 = vmatpush.xpose.msra.mxu0 0.0
        %1104 = vmatpush.xpose.msra.mxu0 %v1087
        %1105 = vmatmul.f32.gmra.mxu0 %v1084
        %v1106 = vpop.f32.mrf.mxu0
        %v1107 = vadd.f32 0.0, %v1106
        %1108 = vdwg.mxu0
        %v1109 = vmul.f32 %v1107, 0.17677669
        %v1110 = vperm.slane %v956, 0
        %v1111 = vadd.f32 %v1109, %v1110
        %vm1112 = vcmask 64512
        %v1113 = vsel %vm1112, %v1111, -inf
        %1114 = vmax.xlane.f32.xlu0 %v1113
        %v1115 = vpop.xlane.xlu0 %1114
        %v1116 = vsub.f32 %v1111, %v1115
        %v1117 = vmul.f32 %v1116, 1.442695
        %v1118 = vpow.pop %v1117
        %v1119 = vsel %vm1112, %v1118, 0.0
        %1120 = vadd.xlane.f32.xlu0 %v1119
        %v1121 = vpop.xlane.xlu0 %1120
        %v1122 = vrcp.pop %v1121
        %v1123 = vmul.f32 %v1118, %v1122
        %v1125 = vsel %vm1112, %v1123, 0
        %1127 = vmatpush.msra.mxu0 0.0
        %1128 = vmatpush.msra.mxu0 0.0
        %1129 = vmatpush.msra.mxu0 0.0
        %1130 = vmatpush.msra.mxu0 0.0
        %1131 = vmatpush.msra.mxu0 0.0
        %1132 = vmatpush.msra.mxu0 0.0
        %1133 = vmatpush.msra.mxu0 0.0
        %1134 = vmatpush.msra.mxu0 0.0
        %1135 = vmatpush.msra.mxu0 0.0
        %1136 = vmatpush.msra.mxu0 0.0
        %1137 = vmatpush.msra.mxu0 0.0
        %1138 = vmatpush.msra.mxu0 0.0
        %1139 = vmatpush.msra.mxu0 0.0
        %1140 = vmatpush.msra.mxu0 0.0
        %1141 = vmatpush.msra.mxu0 0.0
        %1142 = vmatpush.msra.mxu0 %v1077
        %1143 = vmatmul.f32.gmra.mxu0 %v1125
        %v1144 = vpop.f32.mrf.mxu0
        %v1145 = vadd.f32 0.0, %v1144
        %1146 = vdwg.mxu0
        %1147 = vrot.lane.b32.xlu0 %v1031, 96
        %v1148 = vpop.permute.xlu0 %1147
        %1149 = vrot.lane.b32.xlu0 %v1054, 96
        %v1150 = vpop.permute.xlu0 %1149
        %v1151 = vsel %vm1082, %v1148, 0
        %v1153 = vsel %vm1082, %v1150, 0
        %1155 = vmatpush.xpose.msra.mxu0 0.0
        %1156 = vmatpush.xpose.msra.mxu0 0.0
        %1157 = vmatpush.xpose.msra.mxu0 0.0
        %1158 = vmatpush.xpose.msra.mxu0 0.0
        %1159 = vmatpush.xpose.msra.mxu0 0.0
        %1160 = vmatpush.xpose.msra.mxu0 0.0
        %1161 = vmatpush.xpose.msra.mxu0 0.0
        %1162 = vmatpush.xpose.msra.mxu0 0.0
        %1163 = vmatpush.xpose.msra.mxu0 0.0
        %1164 = vmatpush.xpose.msra.mxu0 0.0
        %1165 = vmatpush.xpose.msra.mxu0 0.0
        %1166 = vmatpush.xpose.msra.mxu0 0.0
        %1167 = vmatpush.xpose.msra.mxu0 0.0
        %1168 = vmatpush.xpose.msra.mxu0 0.0
        %1169 = vmatpush.xpose.msra.mxu0 0.0
        %1170 = vmatpush.xpose.msra.mxu0 %v1153
        %1171 = vmatmul.f32.gmra.mxu0 %v1151
        %v1172 = vpop.f32.mrf.mxu0
        %v1173 = vadd.f32 0.0, %v1172
        %1174 = vdwg.mxu0
        %v1175 = vmul.f32 %v1173, 0.17677669
        %v1176 = vadd.f32 %v1175, %v1110
        %v1177 = vsel %vm1112, %v1176, -inf
        %1178 = vmax.xlane.f32.xlu0 %v1177
        %v1179 = vpop.xlane.xlu0 %1178
        %v1180 = vsub.f32 %v1176, %v1179
        %v1181 = vmul.f32 %v1180, 1.442695
        %v1182 = vpow.pop %v1181
        %v1183 = vsel %vm1112, %v1182, 0.0
        %1184 = vadd.xlane.f32.xlu0 %v1183
        %v1185 = vpop.xlane.xlu0 %1184
        %v1186 = vrcp.pop %v1185
        %v1187 = vmul.f32 %v1182, %v1186
        %1189 = vrot.lane.b32.xlu0 %v1077, 96
        %v1190 = vpop.permute.xlu0 %1189
        %v1193 = vsel %vm1112, %v1187, 0
        %1195 = vmatpush.msra.mxu0 0.0
        %1196 = vmatpush.msra.mxu0 0.0
        %1197 = vmatpush.msra.mxu0 0.0
        %1198 = vmatpush.msra.mxu0 0.0
        %1199 = vmatpush.msra.mxu0 0.0
        %1200 = vmatpush.msra.mxu0 0.0
        %1201 = vmatpush.msra.mxu0 0.0
        %1202 = vmatpush.msra.mxu0 0.0
        %1203 = vmatpush.msra.mxu0 0.0
        %1204 = vmatpush.msra.mxu0 0.0
        %1205 = vmatpush.msra.mxu0 0.0
        %1206 = vmatpush.msra.mxu0 0.0
        %1207 = vmatpush.msra.mxu0 0.0
        %1208 = vmatpush.msra.mxu0 0.0
        %1209 = vmatpush.msra.mxu0 0.0
        %1210 = vmatpush.msra.mxu0 %v1190
        %1211 = vmatmul.f32.gmra.mxu0 %v1193
        %v1212 = vpop.f32.mrf.mxu0
        %v1213 = vadd.f32 0.0, %v1212
        %1214 = vdwg.mxu0
        %1215 = vrot.lane.b32.xlu0 %v1031, 64
        %v1216 = vpop.permute.xlu0 %1215
        %1217 = vrot.lane.b32.xlu0 %v1054, 64
        %v1218 = vpop.permute.xlu0 %1217
        %v1219 = vsel %vm1082, %v1216, 0
        %v1221 = vsel %vm1082, %v1218, 0
        %1223 = vmatpush.xpose.msra.mxu0 0.0
        %1224 = vmatpush.xpose.msra.mxu0 0.0
        %1225 = vmatpush.xpose.msra.mxu0 0.0
        %1226 = vmatpush.xpose.msra.mxu0 0.0
        %1227 = vmatpush.xpose.msra.mxu0 0.0
        %1228 = vmatpush.xpose.msra.mxu0 0.0
        %1229 = vmatpush.xpose.msra.mxu0 0.0
        %1230 = vmatpush.xpose.msra.mxu0 0.0
        %1231 = vmatpush.xpose.msra.mxu0 0.0
        %1232 = vmatpush.xpose.msra.mxu0 0.0
        %1233 = vmatpush.xpose.msra.mxu0 0.0
        %1234 = vmatpush.xpose.msra.mxu0 0.0
        %1235 = vmatpush.xpose.msra.mxu0 0.0
        %1236 = vmatpush.xpose.msra.mxu0 0.0
        %1237 = vmatpush.xpose.msra.mxu0 0.0
        %1238 = vmatpush.xpose.msra.mxu0 %v1221
        %1239 = vmatmul.f32.gmra.mxu0 %v1219
        %v1240 = vpop.f32.mrf.mxu0
        %v1241 = vadd.f32 0.0, %v1240
        %1242 = vdwg.mxu0
        %v1243 = vmul.f32 %v1241, 0.17677669
        %v1244 = vadd.f32 %v1243, %v1110
        %v1245 = vsel %vm1112, %v1244, -inf
        %1246 = vmax.xlane.f32.xlu0 %v1245
        %v1247 = vpop.xlane.xlu0 %1246
        %v1248 = vsub.f32 %v1244, %v1247
        %v1249 = vmul.f32 %v1248, 1.442695
        %v1250 = vpow.pop %v1249
        %v1251 = vsel %vm1112, %v1250, 0.0
        %1252 = vadd.xlane.f32.xlu0 %v1251
        %v1253 = vpop.xlane.xlu0 %1252
        %v1254 = vrcp.pop %v1253
        %v1255 = vmul.f32 %v1250, %v1254
        %1256 = vrot.lane.b32.xlu0 %v1077, 64
        %v1257 = vpop.permute.xlu0 %1256
        %v1260 = vsel %vm1112, %v1255, 0
        %1262 = vmatpush.msra.mxu0 0.0
        %1263 = vmatpush.msra.mxu0 0.0
        %1264 = vmatpush.msra.mxu0 0.0
        %1265 = vmatpush.msra.mxu0 0.0
        %1266 = vmatpush.msra.mxu0 0.0
        %1267 = vmatpush.msra.mxu0 0.0
        %1268 = vmatpush.msra.mxu0 0.0
        %1269 = vmatpush.msra.mxu0 0.0
        %1270 = vmatpush.msra.mxu0 0.0
        %1271 = vmatpush.msra.mxu0 0.0
        %1272 = vmatpush.msra.mxu0 0.0
        %1273 = vmatpush.msra.mxu0 0.0
        %1274 = vmatpush.msra.mxu0 0.0
        %1275 = vmatpush.msra.mxu0 0.0
        %1276 = vmatpush.msra.mxu0 0.0
        %1277 = vmatpush.msra.mxu0 %v1257
        %1278 = vmatmul.f32.gmra.mxu0 %v1260
        %v1279 = vpop.f32.mrf.mxu0
        %v1280 = vadd.f32 0.0, %v1279
        %1281 = vdwg.mxu0
        %1282 = vrot.lane.b32.xlu0 %v1031, 32
        %v1283 = vpop.permute.xlu0 %1282
        %1284 = vrot.lane.b32.xlu0 %v1054, 32
        %v1285 = vpop.permute.xlu0 %1284
        %v1286 = vsel %vm1082, %v1283, 0
        %v1288 = vsel %vm1082, %v1285, 0
        %1290 = vmatpush.xpose.msra.mxu0 0.0
        %1291 = vmatpush.xpose.msra.mxu0 0.0
        %1292 = vmatpush.xpose.msra.mxu0 0.0
        %1293 = vmatpush.xpose.msra.mxu0 0.0
        %1294 = vmatpush.xpose.msra.mxu0 0.0
        %1295 = vmatpush.xpose.msra.mxu0 0.0
        %1296 = vmatpush.xpose.msra.mxu0 0.0
        %1297 = vmatpush.xpose.msra.mxu0 0.0
        %1298 = vmatpush.xpose.msra.mxu0 0.0
        %1299 = vmatpush.xpose.msra.mxu0 0.0
        %1300 = vmatpush.xpose.msra.mxu0 0.0
        %1301 = vmatpush.xpose.msra.mxu0 0.0
        %1302 = vmatpush.xpose.msra.mxu0 0.0
        %1303 = vmatpush.xpose.msra.mxu0 0.0
        %1304 = vmatpush.xpose.msra.mxu0 0.0
        %1305 = vmatpush.xpose.msra.mxu0 %v1288
        %1306 = vmatmul.f32.gmra.mxu0 %v1286
        %v1307 = vpop.f32.mrf.mxu0
        %v1308 = vadd.f32 0.0, %v1307
        %1309 = vdwg.mxu0
        %v1310 = vmul.f32 %v1308, 0.17677669
        %v1311 = vadd.f32 %v1310, %v1110
        %v1312 = vsel %vm1112, %v1311, -inf
        %1313 = vmax.xlane.f32.xlu0 %v1312
        %v1314 = vpop.xlane.xlu0 %1313
        %v1315 = vsub.f32 %v1311, %v1314
        %v1316 = vmul.f32 %v1315, 1.442695
        %v1317 = vpow.pop %v1316
        %v1318 = vsel %vm1112, %v1317, 0.0
        %1319 = vadd.xlane.f32.xlu0 %v1318
        %v1320 = vpop.xlane.xlu0 %1319
        %v1321 = vrcp.pop %v1320
        %v1322 = vmul.f32 %v1317, %v1321
        %1323 = vrot.lane.b32.xlu0 %v1077, 32
        %v1324 = vpop.permute.xlu0 %1323
        %v1327 = vsel %vm1112, %v1322, 0
        %1329 = vmatpush.msra.mxu0 0.0
        %1330 = vmatpush.msra.mxu0 0.0
        %1331 = vmatpush.msra.mxu0 0.0
        %1332 = vmatpush.msra.mxu0 0.0
        %1333 = vmatpush.msra.mxu0 0.0
        %1334 = vmatpush.msra.mxu0 0.0
        %1335 = vmatpush.msra.mxu0 0.0
        %1336 = vmatpush.msra.mxu0 0.0
        %1337 = vmatpush.msra.mxu0 0.0
        %1338 = vmatpush.msra.mxu0 0.0
        %1339 = vmatpush.msra.mxu0 0.0
        %1340 = vmatpush.msra.mxu0 0.0
        %1341 = vmatpush.msra.mxu0 0.0
        %1342 = vmatpush.msra.mxu0 0.0
        %1343 = vmatpush.msra.mxu0 0.0
        %1344 = vmatpush.msra.mxu0 %v1324
        %1345 = vmatmul.f32.gmra.mxu0 %v1327
        %v1346 = vpop.f32.mrf.mxu0
        %v1347 = vadd.f32 0.0, %v1346
        %1348 = vdwg.mxu0
        %1350 = vrot.lane.b32.xlu0 %v1213, 32
        %v1351 = vpop.permute.xlu0 %1350
        %1354 = vrot.lane.b32.xlu0 %v1280, 64
        %v1355 = vpop.permute.xlu0 %1354
        %1358 = vrot.lane.b32.xlu0 %v1347, 96
        %v1359 = vpop.permute.xlu0 %1358
        %v1361 = vsel %vm1082, %v1145, %v1351
        %vm1362 = vcmask 523264
        %v1363 = vsel %vm1362, %v1361, %v1355
        %vm1364 = vcmask 785408
        %v1365 = vsel %vm1364, %v1363, %v1359
        %v1367 = vsel %vm1082, %v1034, 0
        %v1370 = vsel %vm1082, %v1057, 0
        %1372 = vmatpush.xpose.msra.mxu0 0.0
        %1373 = vmatpush.xpose.msra.mxu0 0.0
        %1374 = vmatpush.xpose.msra.mxu0 0.0
        %1375 = vmatpush.xpose.msra.mxu0 0.0
        %1376 = vmatpush.xpose.msra.mxu0 0.0
        %1377 = vmatpush.xpose.msra.mxu0 0.0
        %1378 = vmatpush.xpose.msra.mxu0 0.0
        %1379 = vmatpush.xpose.msra.mxu0 0.0
        %1380 = vmatpush.xpose.msra.mxu0 0.0
        %1381 = vmatpush.xpose.msra.mxu0 0.0
        %1382 = vmatpush.xpose.msra.mxu0 0.0
        %1383 = vmatpush.xpose.msra.mxu0 0.0
        %1384 = vmatpush.xpose.msra.mxu0 0.0
        %1385 = vmatpush.xpose.msra.mxu0 0.0
        %1386 = vmatpush.xpose.msra.mxu0 0.0
        %1387 = vmatpush.xpose.msra.mxu0 %v1370
        %1388 = vmatmul.f32.gmra.mxu0 %v1367
        %v1389 = vpop.f32.mrf.mxu0
        %v1390 = vadd.f32 0.0, %v1389
        %1391 = vdwg.mxu0
        %v1392 = vmul.f32 %v1390, 0.17677669
        %v1393 = vperm.slane %v956, 1
        %v1394 = vadd.f32 %v1392, %v1393
        %v1395 = vsel %vm1112, %v1394, -inf
        %1396 = vmax.xlane.f32.xlu0 %v1395
        %v1397 = vpop.xlane.xlu0 %1396
        %v1398 = vsub.f32 %v1394, %v1397
        %v1399 = vmul.f32 %v1398, 1.442695
        %v1400 = vpow.pop %v1399
        %v1401 = vsel %vm1112, %v1400, 0.0
        %1402 = vadd.xlane.f32.xlu0 %v1401
        %v1403 = vpop.xlane.xlu0 %1402
        %v1404 = vrcp.pop %v1403
        %v1405 = vmul.f32 %v1400, %v1404
        %v1407 = vsel %vm1112, %v1405, 0
        %1409 = vmatpush.msra.mxu0 0.0
        %1410 = vmatpush.msra.mxu0 0.0
        %1411 = vmatpush.msra.mxu0 0.0
        %1412 = vmatpush.msra.mxu0 0.0
        %1413 = vmatpush.msra.mxu0 0.0
        %1414 = vmatpush.msra.mxu0 0.0
        %1415 = vmatpush.msra.mxu0 0.0
        %1416 = vmatpush.msra.mxu0 0.0
        %1417 = vmatpush.msra.mxu0 0.0
        %1418 = vmatpush.msra.mxu0 0.0
        %1419 = vmatpush.msra.mxu0 0.0
        %1420 = vmatpush.msra.mxu0 0.0
        %1421 = vmatpush.msra.mxu0 0.0
        %1422 = vmatpush.msra.mxu0 0.0
        %1423 = vmatpush.msra.mxu0 0.0
        %1424 = vmatpush.msra.mxu0 %v1080
        %1425 = vmatmul.f32.gmra.mxu0 %v1407
        %v1426 = vpop.f32.mrf.mxu0
        %v1427 = vadd.f32 0.0, %v1426
        %1428 = vdwg.mxu0
        %1429 = vrot.lane.b32.xlu0 %v1034, 96
        %v1430 = vpop.permute.xlu0 %1429
        %1431 = vrot.lane.b32.xlu0 %v1057, 96
        %v1432 = vpop.permute.xlu0 %1431
        %v1433 = vsel %vm1082, %v1430, 0
        %v1435 = vsel %vm1082, %v1432, 0
        %1437 = vmatpush.xpose.msra.mxu0 0.0
        %1438 = vmatpush.xpose.msra.mxu0 0.0
        %1439 = vmatpush.xpose.msra.mxu0 0.0
        %1440 = vmatpush.xpose.msra.mxu0 0.0
        %1441 = vmatpush.xpose.msra.mxu0 0.0
        %1442 = vmatpush.xpose.msra.mxu0 0.0
        %1443 = vmatpush.xpose.msra.mxu0 0.0
        %1444 = vmatpush.xpose.msra.mxu0 0.0
        %1445 = vmatpush.xpose.msra.mxu0 0.0
        %1446 = vmatpush.xpose.msra.mxu0 0.0
        %1447 = vmatpush.xpose.msra.mxu0 0.0
        %1448 = vmatpush.xpose.msra.mxu0 0.0
        %1449 = vmatpush.xpose.msra.mxu0 0.0
        %1450 = vmatpush.xpose.msra.mxu0 0.0
        %1451 = vmatpush.xpose.msra.mxu0 0.0
        %1452 = vmatpush.xpose.msra.mxu0 %v1435
        %1453 = vmatmul.f32.gmra.mxu0 %v1433
        %v1454 = vpop.f32.mrf.mxu0
        %v1455 = vadd.f32 0.0, %v1454
        %1456 = vdwg.mxu0
        %v1457 = vmul.f32 %v1455, 0.17677669
        %v1458 = vadd.f32 %v1457, %v1393
        %v1459 = vsel %vm1112, %v1458, -inf
        %1460 = vmax.xlane.f32.xlu0 %v1459
        %v1461 = vpop.xlane.xlu0 %1460
        %v1462 = vsub.f32 %v1458, %v1461
        %v1463 = vmul.f32 %v1462, 1.442695
        %v1464 = vpow.pop %v1463
        %v1465 = vsel %vm1112, %v1464, 0.0
        %1466 = vadd.xlane.f32.xlu0 %v1465
        %v1467 = vpop.xlane.xlu0 %1466
        %v1468 = vrcp.pop %v1467
        %v1469 = vmul.f32 %v1464, %v1468
        %1471 = vrot.lane.b32.xlu0 %v1080, 96
        %v1472 = vpop.permute.xlu0 %1471
        %v1475 = vsel %vm1112, %v1469, 0
        %1477 = vmatpush.msra.mxu0 0.0
        %1478 = vmatpush.msra.mxu0 0.0
        %1479 = vmatpush.msra.mxu0 0.0
        %1480 = vmatpush.msra.mxu0 0.0
        %1481 = vmatpush.msra.mxu0 0.0
        %1482 = vmatpush.msra.mxu0 0.0
        %1483 = vmatpush.msra.mxu0 0.0
        %1484 = vmatpush.msra.mxu0 0.0
        %1485 = vmatpush.msra.mxu0 0.0
        %1486 = vmatpush.msra.mxu0 0.0
        %1487 = vmatpush.msra.mxu0 0.0
        %1488 = vmatpush.msra.mxu0 0.0
        %1489 = vmatpush.msra.mxu0 0.0
        %1490 = vmatpush.msra.mxu0 0.0
        %1491 = vmatpush.msra.mxu0 0.0
        %1492 = vmatpush.msra.mxu0 %v1472
        %1493 = vmatmul.f32.gmra.mxu0 %v1475
        %v1494 = vpop.f32.mrf.mxu0
        %v1495 = vadd.f32 0.0, %v1494
        %1496 = vdwg.mxu0
        %1497 = vrot.lane.b32.xlu0 %v1034, 64
        %v1498 = vpop.permute.xlu0 %1497
        %1499 = vrot.lane.b32.xlu0 %v1057, 64
        %v1500 = vpop.permute.xlu0 %1499
        %v1501 = vsel %vm1082, %v1498, 0
        %v1503 = vsel %vm1082, %v1500, 0
        %1505 = vmatpush.xpose.msra.mxu0 0.0
        %1506 = vmatpush.xpose.msra.mxu0 0.0
        %1507 = vmatpush.xpose.msra.mxu0 0.0
        %1508 = vmatpush.xpose.msra.mxu0 0.0
        %1509 = vmatpush.xpose.msra.mxu0 0.0
        %1510 = vmatpush.xpose.msra.mxu0 0.0
        %1511 = vmatpush.xpose.msra.mxu0 0.0
        %1512 = vmatpush.xpose.msra.mxu0 0.0
        %1513 = vmatpush.xpose.msra.mxu0 0.0
        %1514 = vmatpush.xpose.msra.mxu0 0.0
        %1515 = vmatpush.xpose.msra.mxu0 0.0
        %1516 = vmatpush.xpose.msra.mxu0 0.0
        %1517 = vmatpush.xpose.msra.mxu0 0.0
        %1518 = vmatpush.xpose.msra.mxu0 0.0
        %1519 = vmatpush.xpose.msra.mxu0 0.0
        %1520 = vmatpush.xpose.msra.mxu0 %v1503
        %1521 = vmatmul.f32.gmra.mxu0 %v1501
        %v1522 = vpop.f32.mrf.mxu0
        %v1523 = vadd.f32 0.0, %v1522
        %1524 = vdwg.mxu0
        %v1525 = vmul.f32 %v1523, 0.17677669
        %v1526 = vadd.f32 %v1525, %v1393
        %v1527 = vsel %vm1112, %v1526, -inf
        %1528 = vmax.xlane.f32.xlu0 %v1527
        %v1529 = vpop.xlane.xlu0 %1528
        %v1530 = vsub.f32 %v1526, %v1529
        %v1531 = vmul.f32 %v1530, 1.442695
        %v1532 = vpow.pop %v1531
        %v1533 = vsel %vm1112, %v1532, 0.0
        %1534 = vadd.xlane.f32.xlu0 %v1533
        %v1535 = vpop.xlane.xlu0 %1534
        %v1536 = vrcp.pop %v1535
        %v1537 = vmul.f32 %v1532, %v1536
        %1538 = vrot.lane.b32.xlu0 %v1080, 64
        %v1539 = vpop.permute.xlu0 %1538
        %v1542 = vsel %vm1112, %v1537, 0
        %1544 = vmatpush.msra.mxu0 0.0
        %1545 = vmatpush.msra.mxu0 0.0
        %1546 = vmatpush.msra.mxu0 0.0
        %1547 = vmatpush.msra.mxu0 0.0
        %1548 = vmatpush.msra.mxu0 0.0
        %1549 = vmatpush.msra.mxu0 0.0
        %1550 = vmatpush.msra.mxu0 0.0
        %1551 = vmatpush.msra.mxu0 0.0
        %1552 = vmatpush.msra.mxu0 0.0
        %1553 = vmatpush.msra.mxu0 0.0
        %1554 = vmatpush.msra.mxu0 0.0
        %1555 = vmatpush.msra.mxu0 0.0
        %1556 = vmatpush.msra.mxu0 0.0
        %1557 = vmatpush.msra.mxu0 0.0
        %1558 = vmatpush.msra.mxu0 0.0
        %1559 = vmatpush.msra.mxu0 %v1539
        %1560 = vmatmul.f32.gmra.mxu0 %v1542
        %v1561 = vpop.f32.mrf.mxu0
        %v1562 = vadd.f32 0.0, %v1561
        %1563 = vdwg.mxu0
        %1564 = vrot.lane.b32.xlu0 %v1034, 32
        %v1565 = vpop.permute.xlu0 %1564
        %1566 = vrot.lane.b32.xlu0 %v1057, 32
        %v1567 = vpop.permute.xlu0 %1566
        %v1568 = vsel %vm1082, %v1565, 0
        %v1570 = vsel %vm1082, %v1567, 0
        %1572 = vmatpush.xpose.msra.mxu0 0.0
        %1573 = vmatpush.xpose.msra.mxu0 0.0
        %1574 = vmatpush.xpose.msra.mxu0 0.0
        %1575 = vmatpush.xpose.msra.mxu0 0.0
        %1576 = vmatpush.xpose.msra.mxu0 0.0
        %1577 = vmatpush.xpose.msra.mxu0 0.0
        %1578 = vmatpush.xpose.msra.mxu0 0.0
        %1579 = vmatpush.xpose.msra.mxu0 0.0
        %1580 = vmatpush.xpose.msra.mxu0 0.0
        %1581 = vmatpush.xpose.msra.mxu0 0.0
        %1582 = vmatpush.xpose.msra.mxu0 0.0
        %1583 = vmatpush.xpose.msra.mxu0 0.0
        %1584 = vmatpush.xpose.msra.mxu0 0.0
        %1585 = vmatpush.xpose.msra.mxu0 0.0
        %1586 = vmatpush.xpose.msra.mxu0 0.0
        %1587 = vmatpush.xpose.msra.mxu0 %v1570
        %1588 = vmatmul.f32.gmra.mxu0 %v1568
        %v1589 = vpop.f32.mrf.mxu0
        %v1590 = vadd.f32 0.0, %v1589
        %1591 = vdwg.mxu0
        %v1592 = vmul.f32 %v1590, 0.17677669
        %v1593 = vadd.f32 %v1592, %v1393
        %v1594 = vsel %vm1112, %v1593, -inf
        %1595 = vmax.xlane.f32.xlu0 %v1594
        %v1596 = vpop.xlane.xlu0 %1595
        %v1597 = vsub.f32 %v1593, %v1596
        %v1598 = vmul.f32 %v1597, 1.442695
        %v1599 = vpow.pop %v1598
        %v1600 = vsel %vm1112, %v1599, 0.0
        %1601 = vadd.xlane.f32.xlu0 %v1600
        %v1602 = vpop.xlane.xlu0 %1601
        %v1603 = vrcp.pop %v1602
        %v1604 = vmul.f32 %v1599, %v1603
        %1605 = vrot.lane.b32.xlu0 %v1080, 32
        %v1606 = vpop.permute.xlu0 %1605
        %v1609 = vsel %vm1112, %v1604, 0
        %1611 = vmatpush.msra.mxu0 0.0
        %1612 = vmatpush.msra.mxu0 0.0
        %1613 = vmatpush.msra.mxu0 0.0
        %1614 = vmatpush.msra.mxu0 0.0
        %1615 = vmatpush.msra.mxu0 0.0
        %1616 = vmatpush.msra.mxu0 0.0
        %1617 = vmatpush.msra.mxu0 0.0
        %1618 = vmatpush.msra.mxu0 0.0
        %1619 = vmatpush.msra.mxu0 0.0
        %1620 = vmatpush.msra.mxu0 0.0
        %1621 = vmatpush.msra.mxu0 0.0
        %1622 = vmatpush.msra.mxu0 0.0
        %1623 = vmatpush.msra.mxu0 0.0
        %1624 = vmatpush.msra.mxu0 0.0
        %1625 = vmatpush.msra.mxu0 0.0
        %1626 = vmatpush.msra.mxu0 %v1606
        %1627 = vmatmul.f32.gmra.mxu0 %v1609
        %v1628 = vpop.f32.mrf.mxu0
        %v1629 = vadd.f32 0.0, %v1628
        %1630 = vdwg.mxu0
        %1632 = vrot.lane.b32.xlu0 %v1495, 32
        %v1633 = vpop.permute.xlu0 %1632
        %1636 = vrot.lane.b32.xlu0 %v1562, 64
        %v1637 = vpop.permute.xlu0 %1636
        %1640 = vrot.lane.b32.xlu0 %v1629, 96
        %v1641 = vpop.permute.xlu0 %1640
        %v1643 = vsel %vm1082, %v1427, %v1633
        %v1644 = vsel %vm1362, %v1643, %v1637
        %v1645 = vsel %vm1364, %v1644, %v1641
        %v1646 = vld [vmem:[%s857] sm:$0xff]
        %v1647 = vld [vmem:[%s857 + $0x8] sm:$0xff]
        %v1648 = vld [vmem:[%s857 + $0x10] sm:$0xff]
        %v1649 = vld [vmem:[%s857 + $0x18] sm:$0xff]
        %v1650 = vld [vmem:[%s857 + $0x20] sm:$0xff]
        %v1651 = vld [vmem:[%s857 + $0x28] sm:$0xff]
        %v1652 = vld [vmem:[%s857 + $0x30] sm:$0xff]
        %v1653 = vld [vmem:[%s857 + $0x38] sm:$0xff]
        %v1654 = vld [vmem:[%s857 + $0x40] sm:$0xff]
        %v1655 = vld [vmem:[%s857 + $0x48] sm:$0xff]
        %v1656 = vld [vmem:[%s857 + $0x50] sm:$0xff]
        %v1657 = vld [vmem:[%s857 + $0x58] sm:$0xff]
        %v1658 = vld [vmem:[%s857 + $0x60] sm:$0xff]
        %v1659 = vld [vmem:[%s857 + $0x68] sm:$0xff]
        %v1660 = vld [vmem:[%s857 + $0x70] sm:$0xff]
        %v1661 = vld [vmem:[%s857 + $0x78] sm:$0xff]
        %v1662 = vld [vmem:[%s860] sm:$0x1]
        %v1664 = vperm.slane %v1662, 0
        %1666 = vmatpush.msra.mxu0 %v1661
        %1667 = vmatpush.msra.mxu0 %v1660
        %1668 = vmatpush.msra.mxu0 %v1659
        %1669 = vmatpush.msra.mxu0 %v1658
        %1670 = vmatpush.msra.mxu0 %v1657
        %1671 = vmatpush.msra.mxu0 %v1656
        %1672 = vmatpush.msra.mxu0 %v1655
        %1673 = vmatpush.msra.mxu0 %v1654
        %1674 = vmatpush.msra.mxu0 %v1653
        %1675 = vmatpush.msra.mxu0 %v1652
        %1676 = vmatpush.msra.mxu0 %v1651
        %1677 = vmatpush.msra.mxu0 %v1650
        %1678 = vmatpush.msra.mxu0 %v1649
        %1679 = vmatpush.msra.mxu0 %v1648
        %1680 = vmatpush.msra.mxu0 %v1647
        %1681 = vmatpush.msra.mxu0 %v1646
        %1682 = vmatmul.f32.gmra.mxu0 %v1365
        %v1683 = vpop.f32.mrf.mxu0
        %v1684 = vadd.f32 %v1664, %v1683
        %1685 = vmatmul.f32.gmra.mxu0 %v1645
        %v1686 = vpop.f32.mrf.mxu0
        %v1687 = vadd.f32 %v1664, %v1686
        %1688 = vdwg.mxu0
        %v1689 = vadd.f32 %v954, %v1684
        %v1690 = vadd.f32 %v955, %v1687
        %v1691 = vld [vmem:[%s863] sm:$0x1]
        %v1692 = vld [vmem:[%s866] sm:$0x1]
        %1693 = vadd.xlane.f32.xlu0 %v1689
        %v1694 = vpop.xlane.xlu0 %1693
        %1695 = vadd.xlane.f32.xlu0 %v1690
        %v1696 = vpop.xlane.xlu0 %1695
        %v1697 = vrcp.pop 128.0
        %v1698 = vmul.f32 128.0, %v1697
        %v1699 = vsub.f32 1.0, %v1698
        %v1700 = vmul.f32 %v1697, %v1699
        %v1701 = vadd.f32 %v1697, %v1700
        %vm1702 = vweird.f32 %v1697
        %v1703 = vsel %vm1702, %v1697, %v1701
        %v1704 = vmul.f32 %v1694, %v1703
        %v1705 = vmul.f32 %v1696, %v1703
        %v1706 = vsub.f32 %v1689, %v1704
        %v1707 = vsub.f32 %v1690, %v1705
        %v1708 = vmul.f32 %v1706, %v1706
        %v1709 = vmul.f32 %v1707, %v1707
        %1710 = vadd.xlane.f32.xlu0 %v1708
        %v1711 = vpop.xlane.xlu0 %1710
        %1712 = vadd.xlane.f32.xlu0 %v1709
        %v1713 = vpop.xlane.xlu0 %1712
        %v1714 = vmul.f32 %v1711, %v1703
        %v1715 = vmul.f32 %v1713, %v1703
        %v1716 = vadd.f32 %v1714, 1e-12
        %v1717 = vadd.f32 %v1715, 1e-12
        %v1718 = vrsqrt.pop %v1716
        %v1719 = vmul.f32 %v1718, %v1716
        %v1720 = vmul.f32 %v1719, %v1718
        %v1721 = vmul.f32 0.5, %v1720
        %v1722 = vsub.f32 1.5, %v1721
        %v1723 = vmul.f32 %v1718, %v1722
        %vm1724 = vweird.f32 %v1716
        %vm1725 = vweird.f32 %v1718
        %vm1726 = vmor %vm1724, %vm1725
        %v1727 = vsel %vm1726, %v1718, %v1723
        %v1728 = vrsqrt.pop %v1717
        %v1729 = vmul.f32 %v1728, %v1717
        %v1730 = vmul.f32 %v1729, %v1728
        %v1731 = vmul.f32 0.5, %v1730
        %v1732 = vsub.f32 1.5, %v1731
        %v1733 = vmul.f32 %v1728, %v1732
        %vm1734 = vweird.f32 %v1717
        %vm1735 = vweird.f32 %v1728
        %vm1736 = vmor %vm1734, %vm1735
        %v1737 = vsel %vm1736, %v1728, %v1733
        %v1738 = vmul.f32 %v1706, %v1727
        %v1739 = vmul.f32 %v1707, %v1737
        %v1741 = vperm.slane %v1691, 0
        %v1743 = vmul.f32 %v1738, %v1741
        %v1744 = vmul.f32 %v1739, %v1741
        %v1746 = vperm.slane %v1692, 0
        %v1748 = vadd.f32 %v1743, %v1746
        %v1749 = vadd.f32 %v1744, %v1746
        %v1750 = vld [vmem:[%s735] sm:$0xff]
        %v1751 = vld [vmem:[%s735 + $0x8] sm:$0xff]
        %v1752 = vld [vmem:[%s735 + $0x10] sm:$0xff]
        %v1753 = vld [vmem:[%s735 + $0x18] sm:$0xff]
        %v1754 = vld [vmem:[%s735 + $0x20] sm:$0xff]
        %v1755 = vld [vmem:[%s735 + $0x28] sm:$0xff]
        %v1756 = vld [vmem:[%s735 + $0x30] sm:$0xff]
        %v1757 = vld [vmem:[%s735 + $0x38] sm:$0xff]
        %v1758 = vld [vmem:[%s735 + $0x40] sm:$0xff]
        %v1759 = vld [vmem:[%s735 + $0x48] sm:$0xff]
        %v1760 = vld [vmem:[%s735 + $0x50] sm:$0xff]
        %v1761 = vld [vmem:[%s735 + $0x58] sm:$0xff]
        %v1762 = vld [vmem:[%s735 + $0x60] sm:$0xff]
        %v1763 = vld [vmem:[%s735 + $0x68] sm:$0xff]
        %v1764 = vld [vmem:[%s735 + $0x70] sm:$0xff]
        %v1765 = vld [vmem:[%s735 + $0x78] sm:$0xff]
        %v1766 = vld [vmem:[%s735 + $0x80] sm:$0xff]
        %v1767 = vld [vmem:[%s735 + $0x88] sm:$0xff]
        %v1768 = vld [vmem:[%s735 + $0x90] sm:$0xff]
        %v1769 = vld [vmem:[%s735 + $0x98] sm:$0xff]
        %v1770 = vld [vmem:[%s735 + $0xa0] sm:$0xff]
        %v1771 = vld [vmem:[%s735 + $0xa8] sm:$0xff]
        %v1772 = vld [vmem:[%s735 + $0xb0] sm:$0xff]
        %v1773 = vld [vmem:[%s735 + $0xb8] sm:$0xff]
        %v1774 = vld [vmem:[%s735 + $0xc0] sm:$0xff]
        %v1775 = vld [vmem:[%s735 + $0xc8] sm:$0xff]
        %v1776 = vld [vmem:[%s735 + $0xd0] sm:$0xff]
        %v1777 = vld [vmem:[%s735 + $0xd8] sm:$0xff]
        %v1778 = vld [vmem:[%s735 + $0xe0] sm:$0xff]
        %v1779 = vld [vmem:[%s735 + $0xe8] sm:$0xff]
        %v1780 = vld [vmem:[%s735 + $0xf0] sm:$0xff]
        %v1781 = vld [vmem:[%s735 + $0xf8] sm:$0xff]
        %v1782 = vld [vmem:[%s870] sm:$0x3]
        %v1784 = vperm.slane %v1782, 0
        %v1785 = vperm.slane %v1782, 1
        %1788 = vmatpush.msra.mxu0 %v1780
        %1789 = vmatpush.msra.mxu0 %v1778
        %1790 = vmatpush.msra.mxu0 %v1776
        %1791 = vmatpush.msra.mxu0 %v1774
        %1792 = vmatpush.msra.mxu0 %v1772
        %1793 = vmatpush.msra.mxu0 %v1770
        %1794 = vmatpush.msra.mxu0 %v1768
        %1795 = vmatpush.msra.mxu0 %v1766
        %1796 = vmatpush.msra.mxu0 %v1764
        %1797 = vmatpush.msra.mxu0 %v1762
        %1798 = vmatpush.msra.mxu0 %v1760
        %1799 = vmatpush.msra.mxu0 %v1758
        %1800 = vmatpush.msra.mxu0 %v1756
        %1801 = vmatpush.msra.mxu0 %v1754
        %1802 = vmatpush.msra.mxu0 %v1752
        %1803 = vmatpush.msra.mxu0 %v1750
        %1804 = vmatmul.f32.gmra.mxu0 %v1748
        %v1805 = vpop.f32.mrf.mxu0
        %v1806 = vadd.f32 %v1784, %v1805
        %1807 = vmatmul.f32.gmra.mxu0 %v1749
        %v1808 = vpop.f32.mrf.mxu0
        %v1809 = vadd.f32 %v1784, %v1808
        %1810 = vdwg.mxu0
        %1811 = vmatpush.msra.mxu0 %v1781
        %1812 = vmatpush.msra.mxu0 %v1779
        %1813 = vmatpush.msra.mxu0 %v1777
        %1814 = vmatpush.msra.mxu0 %v1775
        %1815 = vmatpush.msra.mxu0 %v1773
        %1816 = vmatpush.msra.mxu0 %v1771
        %1817 = vmatpush.msra.mxu0 %v1769
        %1818 = vmatpush.msra.mxu0 %v1767
        %1819 = vmatpush.msra.mxu0 %v1765
        %1820 = vmatpush.msra.mxu0 %v1763
        %1821 = vmatpush.msra.mxu0 %v1761
        %1822 = vmatpush.msra.mxu0 %v1759
        %1823 = vmatpush.msra.mxu0 %v1757
        %1824 = vmatpush.msra.mxu0 %v1755
        %1825 = vmatpush.msra.mxu0 %v1753
        %1826 = vmatpush.msra.mxu0 %v1751
        %1827 = vmatmul.f32.gmra.mxu0 %v1748
        %v1828 = vpop.f32.mrf.mxu0
        %v1829 = vadd.f32 %v1785, %v1828
        %1830 = vmatmul.f32.gmra.mxu0 %v1749
        %v1831 = vpop.f32.mrf.mxu0
        %v1832 = vadd.f32 %v1785, %v1831
        %1833 = vdwg.mxu0
        %v1834 = vmul.f32 %v1806, 0.5
        %v1835 = vmul.f32 %v1829, 0.5
        %v1836 = vmul.f32 %v1809, 0.5
        %v1837 = vmul.f32 %v1832, 0.5
        %v1838 = vmul.f32 %v1806, 0.044715
        %v1839 = vmul.f32 %v1829, 0.044715
        %v1840 = vmul.f32 %v1809, 0.044715
        %v1841 = vmul.f32 %v1832, 0.044715
        %v1842 = vmul.f32 %v1838, %v1806
        %v1843 = vmul.f32 %v1839, %v1829
        %v1844 = vmul.f32 %v1840, %v1809
        %v1845 = vmul.f32 %v1841, %v1832
        %v1846 = vmul.f32 %v1842, %v1806
        %v1847 = vmul.f32 %v1843, %v1829
        %v1848 = vmul.f32 %v1844, %v1809
        %v1849 = vmul.f32 %v1845, %v1832
        %v1850 = vadd.f32 %v1806, %v1846
        %v1851 = vadd.f32 %v1829, %v1847
        %v1852 = vadd.f32 %v1809, %v1848
        %v1853 = vadd.f32 %v1832, %v1849
        %v1854 = vmul.f32 %v1850, 0.7978846
        %v1855 = vmul.f32 %v1851, 0.7978846
        %v1856 = vmul.f32 %v1852, 0.7978846
        %v1857 = vmul.f32 %v1853, 0.7978846
        %v1858 = vtanh.pop %v1854
        %v1859 = vtanh.pop %v1855
        %v1860 = vtanh.pop %v1856
        %v1861 = vtanh.pop %v1857
        %v1862 = vadd.f32 %v1858, 1.0
        %v1863 = vadd.f32 %v1859, 1.0
        %v1864 = vadd.f32 %v1860, 1.0
        %v1865 = vadd.f32 %v1861, 1.0
        %v1866 = vmul.f32 %v1834, %v1862
        %v1867 = vmul.f32 %v1835, %v1863
        %v1868 = vmul.f32 %v1836, %v1864
        %v1869 = vmul.f32 %v1837, %v1865
        %v1870 = vld [vmem:[%s745] sm:$0xff]
        %v1871 = vld [vmem:[%s745 + $0x8] sm:$0xff]
        %v1872 = vld [vmem:[%s745 + $0x10] sm:$0xff]
        %v1873 = vld [vmem:[%s745 + $0x18] sm:$0xff]
        %v1874 = vld [vmem:[%s745 + $0x20] sm:$0xff]
        %v1875 = vld [vmem:[%s745 + $0x28] sm:$0xff]
        %v1876 = vld [vmem:[%s745 + $0x30] sm:$0xff]
        %v1877 = vld [vmem:[%s745 + $0x38] sm:$0xff]
        %v1878 = vld [vmem:[%s745 + $0x40] sm:$0xff]
        %v1879 = vld [vmem:[%s745 + $0x48] sm:$0xff]
        %v1880 = vld [vmem:[%s745 + $0x50] sm:$0xff]
        %v1881 = vld [vmem:[%s745 + $0x58] sm:$0xff]
        %v1882 = vld [vmem:[%s745 + $0x60] sm:$0xff]
        %v1883 = vld [vmem:[%s745 + $0x68] sm:$0xff]
        %v1884 = vld [vmem:[%s745 + $0x70] sm:$0xff]
        %v1885 = vld [vmem:[%s745 + $0x78] sm:$0xff]
        %v1886 = vld [vmem:[%s745 + $0x80] sm:$0xff]
        %v1887 = vld [vmem:[%s745 + $0x88] sm:$0xff]
        %v1888 = vld [vmem:[%s745 + $0x90] sm:$0xff]
        %v1889 = vld [vmem:[%s745 + $0x98] sm:$0xff]
        %v1890 = vld [vmem:[%s745 + $0xa0] sm:$0xff]
        %v1891 = vld [vmem:[%s745 + $0xa8] sm:$0xff]
        %v1892 = vld [vmem:[%s745 + $0xb0] sm:$0xff]
        %v1893 = vld [vmem:[%s745 + $0xb8] sm:$0xff]
        %v1894 = vld [vmem:[%s745 + $0xc0] sm:$0xff]
        %v1895 = vld [vmem:[%s745 + $0xc8] sm:$0xff]
        %v1896 = vld [vmem:[%s745 + $0xd0] sm:$0xff]
        %v1897 = vld [vmem:[%s745 + $0xd8] sm:$0xff]
        %v1898 = vld [vmem:[%s745 + $0xe0] sm:$0xff]
        %v1899 = vld [vmem:[%s745 + $0xe8] sm:$0xff]
        %v1900 = vld [vmem:[%s745 + $0xf0] sm:$0xff]
        %v1901 = vld [vmem:[%s745 + $0xf8] sm:$0xff]
        %v1902 = vld [vmem:[%s873] sm:$0x1]
        %v1904 = vperm.slane %v1902, 0
        %1906 = vmatpush.msra.mxu0 %v1885
        %1907 = vmatpush.msra.mxu0 %v1884
        %1908 = vmatpush.msra.mxu0 %v1883
        %1909 = vmatpush.msra.mxu0 %v1882
        %1910 = vmatpush.msra.mxu0 %v1881
        %1911 = vmatpush.msra.mxu0 %v1880
        %1912 = vmatpush.msra.mxu0 %v1879
        %1913 = vmatpush.msra.mxu0 %v1878
        %1914 = vmatpush.msra.mxu0 %v1877
        %1915 = vmatpush.msra.mxu0 %v1876
        %1916 = vmatpush.msra.mxu0 %v1875
        %1917 = vmatpush.msra.mxu0 %v1874
        %1918 = vmatpush.msra.mxu0 %v1873
        %1919 = vmatpush.msra.mxu0 %v1872
        %1920 = vmatpush.msra.mxu0 %v1871
        %1921 = vmatpush.msra.mxu0 %v1870
        %1922 = vmatmul.f32.gmra.mxu0 %v1866
        %v1923 = vpop.f32.mrf.mxu0
        %v1924 = vadd.f32 %v1904, %v1923
        %1925 = vmatmul.f32.gmra.mxu0 %v1868
        %v1926 = vpop.f32.mrf.mxu0
        %v1927 = vadd.f32 %v1904, %v1926
        %1928 = vdwg.mxu0
        %1929 = vmatpush.msra.mxu0 %v1901
        %1930 = vmatpush.msra.mxu0 %v1900
        %1931 = vmatpush.msra.mxu0 %v1899
        %1932 = vmatpush.msra.mxu0 %v1898
        %1933 = vmatpush.msra.mxu0 %v1897
        %1934 = vmatpush.msra.mxu0 %v1896
        %1935 = vmatpush.msra.mxu0 %v1895
        %1936 = vmatpush.msra.mxu0 %v1894
        %1937 = vmatpush.msra.mxu0 %v1893
        %1938 = vmatpush.msra.mxu0 %v1892
        %1939 = vmatpush.msra.mxu0 %v1891
        %1940 = vmatpush.msra.mxu0 %v1890
        %1941 = vmatpush.msra.mxu0 %v1889
        %1942 = vmatpush.msra.mxu0 %v1888
        %1943 = vmatpush.msra.mxu0 %v1887
        %1944 = vmatpush.msra.mxu0 %v1886
        %1945 = vmatmul.f32.gmra.mxu0 %v1867
        %v1946 = vpop.f32.mrf.mxu0
        %v1947 = vadd.f32 %v1924, %v1946
        %1948 = vmatmul.f32.gmra.mxu0 %v1869
        %v1949 = vpop.f32.mrf.mxu0
        %v1950 = vadd.f32 %v1927, %v1949
        %1951 = vdwg.mxu0
        %v1952 = vadd.f32 %v1748, %v1947
        %v1953 = vadd.f32 %v1749, %v1950
        %v1954 = vld [vmem:[%s876] sm:$0x1]
        %v1955 = vld [vmem:[%s879] sm:$0x1]
        %1956 = vadd.xlane.f32.xlu0 %v1952
        %v1957 = vpop.xlane.xlu0 %1956
        %1958 = vadd.xlane.f32.xlu0 %v1953
        %v1959 = vpop.xlane.xlu0 %1958
        %v1960 = vmul.f32 %v1957, %v1703
        %v1961 = vmul.f32 %v1959, %v1703
        %v1962 = vsub.f32 %v1952, %v1960
        %v1963 = vsub.f32 %v1953, %v1961
        %v1964 = vmul.f32 %v1962, %v1962
        %v1965 = vmul.f32 %v1963, %v1963
        %1966 = vadd.xlane.f32.xlu0 %v1964
        %v1967 = vpop.xlane.xlu0 %1966
        %1968 = vadd.xlane.f32.xlu0 %v1965
        %v1969 = vpop.xlane.xlu0 %1968
        %v1970 = vmul.f32 %v1967, %v1703
        %v1971 = vmul.f32 %v1969, %v1703
        %v1972 = vadd.f32 %v1970, 1e-12
        %v1973 = vadd.f32 %v1971, 1e-12
        %v1974 = vrsqrt.pop %v1972
        %v1975 = vmul.f32 %v1974, %v1972
        %v1976 = vmul.f32 %v1975, %v1974
        %v1977 = vmul.f32 0.5, %v1976
        %v1978 = vsub.f32 1.5, %v1977
        %v1979 = vmul.f32 %v1974, %v1978
        %vm1980 = vweird.f32 %v1972
        %vm1981 = vweird.f32 %v1974
        %vm1982 = vmor %vm1980, %vm1981
        %v1983 = vsel %vm1982, %v1974, %v1979
        %v1984 = vrsqrt.pop %v1973
        %v1985 = vmul.f32 %v1984, %v1973
        %v1986 = vmul.f32 %v1985, %v1984
        %v1987 = vmul.f32 0.5, %v1986
        %v1988 = vsub.f32 1.5, %v1987
        %v1989 = vmul.f32 %v1984, %v1988
        %vm1990 = vweird.f32 %v1973
        %vm1991 = vweird.f32 %v1984
        %vm1992 = vmor %vm1990, %vm1991
        %v1993 = vsel %vm1992, %v1984, %v1989
        %v1994 = vmul.f32 %v1962, %v1983
        %v1995 = vmul.f32 %v1963, %v1993
        %v1997 = vperm.slane %v1954, 0
        %v1999 = vmul.f32 %v1994, %v1997
        %v2000 = vmul.f32 %v1995, %v1997
        %v2002 = vperm.slane %v1955, 0
        %v2004 = vadd.f32 %v1999, %v2002
        %v2005 = vadd.f32 %v2000, %v2002
        %2006 = vst [vmem:[#allocation2] sm:$0xff] %v2004
        %2007 = vst [vmem:[#allocation2 + $0x8] sm:$0xff] %v2005
        %2008 = vst [vmem:[%s884] sm:$0xff] %v2004
        %2009 = vst [vmem:[%s884 + $0x8] sm:$0xff] %v2005
        %p2010 = scmp.eq.s32.totalorder %s41, 1
        // Predicated region
        $region113: #{_bert_forward_impl.1} parent=91 // pred_check
          %p2011 = pneg %p2010
        $region114: #{_bert_forward_impl.1} parent=91 // pred_check_branch
          %2013 = sbr.rel (%p2011) target = $region116
        $region115: #{_bert_forward_impl.1} parent=91 // pred_region
          %v2015 = vrot.slane %v2005, 7
          %vm2017 = vcmask 1040384
          %v2018 = vsel %vm2017, %v2004, %v2015
          %v2019 = vld [vmem:[#allocation9] sm:$0xff]
          %v2020 = vld [vmem:[#allocation9 + $0x8] sm:$0xff]
          %v2021 = vld [vmem:[#allocation9 + $0x10] sm:$0xff]
          %v2022 = vld [vmem:[#allocation9 + $0x18] sm:$0xff]
          %v2023 = vld [vmem:[#allocation9 + $0x20] sm:$0xff]
          %v2024 = vld [vmem:[#allocation9 + $0x28] sm:$0xff]
          %v2025 = vld [vmem:[#allocation9 + $0x30] sm:$0xff]
          %v2026 = vld [vmem:[#allocation9 + $0x38] sm:$0xff]
          %v2027 = vld [vmem:[#allocation9 + $0x40] sm:$0xff]
          %v2028 = vld [vmem:[#allocation9 + $0x48] sm:$0xff]
          %v2029 = vld [vmem:[#allocation9 + $0x50] sm:$0xff]
          %v2030 = vld [vmem:[#allocation9 + $0x58] sm:$0xff]
          %v2031 = vld [vmem:[#allocation9 + $0x60] sm:$0xff]
          %v2032 = vld [vmem:[#allocation9 + $0x68] sm:$0xff]
          %v2033 = vld [vmem:[#allocation9 + $0x70] sm:$0xff]
          %v2034 = vld [vmem:[#allocation9 + $0x78] sm:$0xff]
          %v2035 = vld [vmem:[%s17] sm:$0x1]
          %v2037 = vperm.slane %v2035, 0
          %2039 = vmatpush.msra.mxu0 %v2034
          %2040 = vmatpush.msra.mxu0 %v2033
          %2041 = vmatpush.msra.mxu0 %v2032
          %2042 = vmatpush.msra.mxu0 %v2031
          %2043 = vmatpush.msra.mxu0 %v2030
          %2044 = vmatpush.msra.mxu0 %v2029
          %2045 = vmatpush.msra.mxu0 %v2028
          %2046 = vmatpush.msra.mxu0 %v2027
          %2047 = vmatpush.msra.mxu0 %v2026
          %2048 = vmatpush.msra.mxu0 %v2025
          %2049 = vmatpush.msra.mxu0 %v2024
          %2050 = vmatpush.msra.mxu0 %v2023
          %2051 = vmatpush.msra.mxu0 %v2022
          %2052 = vmatpush.msra.mxu0 %v2021
          %2053 = vmatpush.msra.mxu0 %v2020
          %2054 = vmatpush.msra.mxu0 %v2019
          %2055 = vmatmul.f32.gmra.mxu0 %v2018
          %v2056 = vpop.f32.mrf.mxu0
          %v2057 = vadd.f32 %v2037, %v2056
          %2058 = vdwg.mxu0
          %v2059 = vtanh.pop %v2057
          %2060 = vst [vmem:[#allocation12] sm:$0x3] %v2059
        $region116: #{_bert_forward_impl.1} parent=91 // pred_fallthru
          _
        %p2061 = scmp.lt.s32.totalorder %s41, 1
        %s2062 = scalar_select %p2061, %s41, 1
        %s2063 = smul.addr %s2062, 2
        %s2064 = smul.addr %s2063, 8
        %s2065 = scalar_lea.vmem %s19, %s2064
        // Predicated region
        $region117: #{_bert_forward_impl.1} parent=91 // pred_check
          %p2066 = pneg %p492
        $region118: #{_bert_forward_impl.1} parent=91 // pred_check_branch
          %2068 = sbr.rel (%p2066) target = $region120
        $region119: #{_bert_forward_impl.1} parent=91 // pred_region
          %2070 = vsyncadd [#allocation5], 0
          %s2071 = sshll.u32 [#allocation11], 4
          %s2072 = int_to_ptr.vmem [resolvable:$true] %s2071
          %s2073 = sshll.u32 %s18, 4
          %s2074 = int_to_ptr.hbm [resolvable:$true] %s2073
          %2079 = dma.vmem_to_hbm [thread:$0]  %s2072, 256, %s2074, [#allocation5], 128, 128, 8
        $region120: #{_bert_forward_impl.1} parent=91 // pred_fallthru
          _
        // Predicated region
        $region121: #{_bert_forward_impl.1} parent=91 // pred_check
          %p2080 = pneg %p518
        $region122: #{_bert_forward_impl.1} parent=91 // pred_check_branch
          %2082 = sbr.rel (%p2080) target = $region124
        $region123: #{_bert_forward_impl.1} parent=91 // pred_region
          _
        $region124: #{_bert_forward_impl.1} parent=91 // pred_fallthru
          _
        // Predicated region
        $region125: #{_bert_forward_impl.1} parent=91 // pred_check
          %p2083 = pneg %p539
        $region126: #{_bert_forward_impl.1} parent=91 // pred_check_branch
          %2085 = sbr.rel (%p2083) target = $region128
        $region127: #{_bert_forward_impl.1} parent=91 // pred_region
          %2087 = vsyncadd [#allocation13], 0
          %s2089 = sshll.u32 [#allocation12], 4
          %s2090 = int_to_ptr.vmem [resolvable:$true] %s2089
          %s2091 = sshll.u32 %s20, 4
          %s2092 = int_to_ptr.hbm [resolvable:$true] %s2091
          %2094 = dma.vmem_to_hbm [thread:$0]  %s2090, 32, %s2092, [#allocation13]
        $region128: #{_bert_forward_impl.1} parent=91 // pred_fallthru
          _
        // Predicated region
        $region129: #{_bert_forward_impl.1} parent=91 // pred_check
          %p2095 = pneg %p492
        $region130: #{_bert_forward_impl.1} parent=91 // pred_check_branch
          %2097 = sbr.rel (%p2095) target = $region132
        $region131: #{_bert_forward_impl.1} parent=91 // pred_region
          %2099 = dma.done [#allocation5], 256
        $region132: #{_bert_forward_impl.1} parent=91 // pred_fallthru
          _
        // Predicated region
        $region133: #{_bert_forward_impl.1} parent=91 // pred_check
          %p2100 = pneg %p539
        $region134: #{_bert_forward_impl.1} parent=91 // pred_check_branch
          %2102 = sbr.rel (%p2100) target = $region136
        $region135: #{_bert_forward_impl.1} parent=91 // pred_region
          %2104 = dma.done [#allocation13], 32
        $region136: #{_bert_forward_impl.1} parent=91 // pred_fallthru
          _
      $region92: #{_bert_forward_impl.1} parent=5 // pred_fallthru
        _
      %p2105 = scmp.le.s32.totalorder 2, %s36
      // Predicated region
      $region137: #{_bert_forward_impl.1} parent=5 // pred_check
        %p2106 = pneg %p2105
      $region138: #{_bert_forward_impl.1} parent=5 // pred_check_branch
        %2108 = sbr.rel (%p2106) target = $region140
      $region139: #{_bert_forward_impl.1} parent=5 // pred_region
        %s2109 = ssub.s32 %s36, 2
        // Predicated region
        $region141: #{_bert_forward_impl.1} parent=139 // pred_check
          %p2110 = pneg %p524
        $region142: #{_bert_forward_impl.1} parent=139 // pred_check_branch
          %2112 = sbr.rel (%p2110) target = $region144
        $region143: #{_bert_forward_impl.1} parent=139 // pred_region
          %p2113 = scmp.lt.s32.totalorder %s42, 1
          %s2114 = scalar_select %p2113, %s42, 1
          %s2115 = smul.addr %s2114, 2
          %s2116 = smul.addr %s2115, 8
          %s2117 = scalar_lea.vmem %s19, %s2116
        $region144: #{_bert_forward_impl.1} parent=139 // pred_fallthru
          _
      $region140: #{_bert_forward_impl.1} parent=5 // pred_fallthru
        _
    $region6: #{_bert_forward_impl.1} parent=1 // loop_footer
      %s40 = sadd.s32 1, %s36
    $region7: #{_bert_forward_impl.1} parent=1 // loop_footer_branch
      %35 = sbr.rel target = $region3
    $region8: #{_bert_forward_impl.1} parent=1 // loop_exit
      _
    %2118 = vsyncpa [#allocation4], 1
    %s2119 = scalar_lea.sflag [#allocation4], 1
    %2120 = vsyncpa %s2119, 1
    %2121 = vsyncpa [#allocation7], 1
    %s2122 = scalar_lea.sflag [#allocation7], 1
    %2123 = vsyncpa %s2122, 1
    %2124 = vsyncpa [#allocation10], 1
    %2125 = vsyncpa [#allocation5], 1
    %s2126 = scalar_lea.sflag [#allocation5], 1
    %2127 = vsyncpa %s2126, 1
    %2128 = vsyncpa [#allocation13], 1

</llo_original>
